<compile_context>
chip_gen: v6e
topology: v6e:2x2x1
jax: 0.10.0
libtpu: 0.0.40
codegen_flags: <defaults>
</compile_context>

<pallas_src>
import jax
import jax.numpy as jnp
import numpy as np
from jax.experimental import pallas as pl
from jax.experimental.pallas import tpu as pltpu

MAX_LENGTH = 10
HIDDEN = 32      # small shape for the synthetic test (module default was 256)
OUTPUT = 10

LANE = 128
MAT_BASE = 16                      # rows [0:16]  : embedding table (padded)
N_MAT = 11                         # 11 (128,128) zero-padded weight matrices
BIAS_ROW = MAT_BASE + N_MAT * 128  # rows [1424:1432]: bias tile
W_ROWS = BIAS_ROW + 8              # 1432
DATA_ROWS = 8 + 128                # row 0: init hidden, rows [8:136]: encoder
NEG = -1e30                        # softmax padding value (exp underflows to 0)


def attn_decoder_kernel(tok_ref, w_ref, data_ref, out_ref, hid_ref):
    t = pl.program_id(0)

    # step 0: load the initial hidden state (row 0 of the data slab) into the carry
    @pl.when(t == 0)
    def _():
        hid_ref[...] = data_ref[0:1, :]

    h = hid_ref[...]                                     # (1,128); lanes >= H are 0

    # --- embedding lookup (dynamic row gather, clamped to valid range) ---
    tok = tok_ref[t]
    tok = jnp.minimum(jnp.maximum(tok, 0), OUTPUT - 1)
    emb = w_ref[pl.ds(tok, 1), :]                        # (1,128)
    # TODO(synk): nn.Dropout is identity in eval mode; train-mode dropout (random
    # mask + 1/(1-p) scaling) is not implemented here.

    dot = lambda a, b: jnp.dot(a, b, preferred_element_type=jnp.float32)
    mat = lambda i: w_ref[MAT_BASE + i * 128: MAT_BASE + (i + 1) * 128, :]
    bias = lambda i: w_ref[BIAS_ROW + i: BIAS_ROW + i + 1, :]

    # --- attention weights: softmax(e @ A_e + h @ A_h + b_attn) ---
    # (concat eliminated; padded lanes carry -1e30 bias -> exact zeros after exp)
    attn_logits = dot(emb, mat(0)) + dot(h, mat(1)) + bias(0)
    m = jnp.max(attn_logits, axis=1, keepdims=True)
    ex = jnp.exp(attn_logits - m)
    aw = ex * pl.reciprocal(jnp.sum(ex, axis=1, keepdims=True), approx=False)

    # --- attn_applied = attn_weights @ encoder_outputs (padded to 128x128) ---
    attn_applied = dot(aw, data_ref[8:8 + 128, :])       # (1,128)

    # --- attn_combine + relu (split weights instead of concat) ---
    x = jnp.maximum(dot(emb, mat(2)) + dot(attn_applied, mat(3)) + bias(1), 0.0)

    # --- single GRU step (PyTorch gate order r, z, n); r/z biases pre-summed ---
    r = jax.nn.sigmoid(dot(x, mat(4)) + dot(h, mat(7)) + bias(2))
    z = jax.nn.sigmoid(dot(x, mat(5)) + dot(h, mat(8)) + bias(3))
    n = jnp.tanh(dot(x, mat(6)) + bias(4) + r * (dot(h, mat(9)) + bias(5)))
    h_new = (1.0 - z) * n + z * h                        # padded lanes stay exactly 0
    hid_ref[...] = h_new

    # --- output projection + log_softmax (padded lanes biased to -1e30) ---
    logits = dot(h_new, mat(10)) + bias(6)
    m2 = jnp.max(logits, axis=1, keepdims=True)
    s = logits - m2
    logp = s - jnp.log(jnp.sum(jnp.exp(s), axis=1, keepdims=True))

    # --- one lane-dense (8,128) store: row0=logp, row1=new hidden, row2=attn_w ---
    out_ref[...] = jnp.concatenate(
        [logp, h_new, aw, jnp.zeros((5, LANE), jnp.float32)], axis=0)


def init_params(key, hidden_size=HIDDEN, output_size=OUTPUT, max_length=MAX_LENGTH):
    """Deterministic parameter init mirroring the PyTorch module's shapes."""
    ks = jax.random.split(key, 11)
    bound = 1.0 / np.sqrt(hidden_size)
    u = lambda k, shape: jax.random.uniform(k, shape, jnp.float32, -bound, bound)
    return {
        "embedding": jax.random.normal(ks[0], (output_size, hidden_size), jnp.float32),
        "attn_w": u(ks[1], (max_length, 2 * hidden_size)),     # nn.Linear(2H, L)
        "attn_b": u(ks[2], (max_length,)),
        "comb_w": u(ks[3], (hidden_size, 2 * hidden_size)),    # nn.Linear(2H, H)
        "comb_b": u(ks[4], (hidden_size,)),
        "gru_wih": u(ks[5], (3 * hidden_size, hidden_size)),   # GRU weight_ih_l0
        "gru_whh": u(ks[6], (3 * hidden_size, hidden_size)),   # GRU weight_hh_l0
        "gru_bih": u(ks[7], (3 * hidden_size,)),
        "gru_bhh": u(ks[8], (3 * hidden_size,)),
        "out_w": u(ks[9], (output_size, hidden_size)),         # nn.Linear(H, O)
        "out_b": u(ks[10], (output_size,)),
    }


def pack_params(params):
    """One-time host-side packing of all weights/biases into a (W_ROWS,128) slab.

    Every weight matrix is stored pre-transposed as (in, out), zero-padded to
    (128,128); the attn/out biases are padded with -1e30 so softmax over the
    full 128 lanes is exact.  Done once, outside jit.
    """
    H, O, L = HIDDEN, OUTPUT, MAX_LENGTH
    slab = np.zeros((W_ROWS, LANE), np.float32)

    def put_mat(idx, w):                      # w: (in_features, out_features)
        r = MAT_BASE + idx * 128
        slab[r:r + w.shape[0], :w.shape[1]] = w

    slab[0:O, 0:H] = np.asarray(params["embedding"], np.float32)

    attn_w = np.asarray(params["attn_w"], np.float32)        # (L, 2H)
    put_mat(0, attn_w[:, :H].T)                              # embedded half
    put_mat(1, attn_w[:, H:].T)                              # hidden half
    comb_w = np.asarray(params["comb_w"], np.float32)        # (H, 2H)
    put_mat(2, comb_w[:, :H].T)
    put_mat(3, comb_w[:, H:].T)
    wih = np.asarray(params["gru_wih"], np.float32)          # (3H, H): r, z, n
    whh = np.asarray(params["gru_whh"], np.float32)
    put_mat(4, wih[0:H].T)        # W_ir
    put_mat(5, wih[H:2 * H].T)    # W_iz
    put_mat(6, wih[2 * H:].T)     # W_in
    put_mat(7, whh[0:H].T)        # W_hr
    put_mat(8, whh[H:2 * H].T)    # W_hz
    put_mat(9, whh[2 * H:].T)     # W_hn
    put_mat(10, np.asarray(params["out_w"], np.float32).T)   # (H, O)

    bih = np.asarray(params["gru_bih"], np.float32)
    bhh = np.asarray(params["gru_bhh"], np.float32)
    slab[BIAS_ROW + 0, :] = NEG
    slab[BIAS_ROW + 0, :L] = np.asarray(params["attn_b"], np.float32)
    slab[BIAS_ROW + 1, :H] = np.asarray(params["comb_b"], np.float32)
    slab[BIAS_ROW + 2, :H] = bih[0:H] + bhh[0:H]             # r gate bias
    slab[BIAS_ROW + 3, :H] = bih[H:2 * H] + bhh[H:2 * H]     # z gate bias
    slab[BIAS_ROW + 4, :H] = bih[2 * H:]                     # b_in
    slab[BIAS_ROW + 5, :H] = bhh[2 * H:]                     # b_hn
    slab[BIAS_ROW + 6, :] = NEG
    slab[BIAS_ROW + 6, :O] = np.asarray(params["out_b"], np.float32)
    return jnp.asarray(slab)


@jax.jit
def attn_decoder_decode(tokens, hidden, encoder_outputs, w_slab):
    """Run T sequential decoder steps inside ONE pallas_call.

    tokens: (T,) int32; hidden: (1,1,H) f32; encoder_outputs: (L,H) f32;
    w_slab: packed weights from pack_params.  T=1 reproduces the module forward.
    """
    T = tokens.shape[0]
    H, O, L = HIDDEN, OUTPUT, MAX_LENGTH

    data = jnp.zeros((DATA_ROWS, LANE), jnp.float32)
    data = data.at[0, :H].set(hidden.reshape(H))
    data = data.at[8:8 + L, :H].set(encoder_outputs)

    out = pl.pallas_call(
        attn_decoder_kernel,
        out_shape=jax.ShapeDtypeStruct((T * 8, LANE), jnp.float32),
        grid_spec=pltpu.PrefetchScalarGridSpec(
            num_scalar_prefetch=1,
            grid=(T,),
            in_specs=[
                pl.BlockSpec((W_ROWS, LANE), lambda t, tok: (0, 0)),   # fetched once
                pl.BlockSpec((DATA_ROWS, LANE), lambda t, tok: (0, 0)),
            ],
            out_specs=pl.BlockSpec((8, LANE), lambda t, tok: (t, 0)),
            scratch_shapes=[pltpu.VMEM((1, LANE), jnp.float32)],        # hidden carry
        ),
        compiler_params=pltpu.CompilerParams(
            dimension_semantics=("arbitrary",)),   # steps are sequential (hidden carry)
    )(tokens.astype(jnp.int32), w_slab, data)

    out = out.reshape(T, 8, LANE)
    logp = out[:, 0, :O]        # (T, O) log-softmax outputs
    hiddens = out[:, 1, :H]     # (T, H) hidden state after each step
    attn_w = out[:, 2, :L]      # (T, L) attention weights
    return logp, hiddens, attn_w


def reference_step(token, hidden, encoder_outputs, params):
    """Pure-JAX reference mirroring the PyTorch forward (eval mode), one step."""
    H = HIDDEN
    embedded = params["embedding"][token[0]][None, :]                  # (1,H)
    h = hidden.reshape(1, H)
    cat1 = jnp.concatenate([embedded, h], axis=1)
    attn_logits = cat1 @ params["attn_w"].T + params["attn_b"]
    aw = jax.nn.softmax(attn_logits, axis=1)
    attn_applied = aw @ encoder_outputs
    cat2 = jnp.concatenate([embedded, attn_applied], axis=1)
    x = jax.nn.relu(cat2 @ params["comb_w"].T + params["comb_b"])
    gi = x @ params["gru_wih"].T + params["gru_bih"]
    gh = h @ params["gru_whh"].T + params["gru_bhh"]
    i_r, i_z, i_n = gi[:, :H], gi[:, H:2 * H], gi[:, 2 * H:]
    h_r, h_z, h_n = gh[:, :H], gh[:, H:2 * H], gh[:, 2 * H:]
    r = jax.nn.sigmoid(i_r + h_r)
    z = jax.nn.sigmoid(i_z + h_z)
    n = jnp.tanh(i_n + r * h_n)
    h_new = (1.0 - z) * n + z * h
    logits = h_new @ params["out_w"].T + params["out_b"]
    logp = jax.nn.log_softmax(logits, axis=1)
    return logp, h_new.reshape(1, 1, H), aw


def reference_decode(tokens, hidden, encoder_outputs, params):
    logps, hids, aws = [], [], []
    h = hidden
    for i in range(tokens.shape[0]):
        logp, h, aw = reference_step(tokens[i:i + 1], h, encoder_outputs, params)
        logps.append(logp)
        hids.append(h.reshape(1, HIDDEN))
        aws.append(aw)
    return (jnp.concatenate(logps, axis=0),
            jnp.concatenate(hids, axis=0),
            jnp.concatenate(aws, axis=0))


if __name__ == "__main__":
    key = jax.random.PRNGKey(0)
    k_param, k_enc, k_tok = jax.random.split(key, 3)

    params = init_params(k_param)
    w_slab = pack_params(params)                                   # packed once
    encoder_outputs = jax.random.normal(k_enc, (MAX_LENGTH, HIDDEN), jnp.float32)
    hidden0 = jnp.zeros((1, 1, HIDDEN), jnp.float32)               # initHidden()

    # teacher-forced 4-step decode, all steps inside one kernel launch
    T = 4
    tokens = jax.random.randint(k_tok, (T,), 0, OUTPUT, jnp.int32)

    logp, hids, attn_w = attn_decoder_decode(tokens, hidden0, encoder_outputs, w_slab)
    jax.block_until_ready((logp, hids, attn_w))

    r_logp, r_hids, r_aw = reference_decode(tokens, hidden0, encoder_outputs, params)
    np.testing.assert_allclose(np.asarray(logp), np.asarray(r_logp), rtol=2e-5, atol=2e-5)
    np.testing.assert_allclose(np.asarray(hids), np.asarray(r_hids), rtol=2e-5, atol=2e-5)
    np.testing.assert_allclose(np.asarray(attn_w), np.asarray(r_aw), rtol=2e-5, atol=2e-5)

    # single step (T=1) == exact semantics of the module's forward()
    logp1, hid1, aw1 = attn_decoder_decode(tokens[:1], hidden0, encoder_outputs, w_slab)
    jax.block_until_ready((logp1, hid1, aw1))
    np.testing.assert_allclose(np.asarray(logp1[0]), np.asarray(r_logp[0]), rtol=2e-5, atol=2e-5)
    np.testing.assert_allclose(np.asarray(aw1[0]), np.asarray(r_aw[0]), rtol=2e-5, atol=2e-5)

    print("KERNEL_OK")
</pallas_src>

<mosaic_0001>
module attributes {stable_mosaic.version = 11 : i64} {
  func.func @attn_decoder_kernel(%arg0: i32, %arg1: memref<4xi32, #tpu.memory_space<smem>>, %arg2: memref<1432x128xf32, #tpu.memory_space<vmem>>, %arg3: memref<136x128xf32, #tpu.memory_space<vmem>>, %arg4: memref<8x128xf32, #tpu.memory_space<vmem>>, %arg5: memref<1x128xf32, #tpu.memory_space<vmem>>) attributes {dimension_semantics = [#tpu.dimension_semantics<arbitrary>], iteration_bounds = array<i64: 4>, scalar_prefetch = 1 : i64, scratch_operands = 1 : i64, tpu.core_type = #tpu.core_type<tc>, window_params = [{pipeline_mode = #tpu.pipeline_mode<synchronous>, transform_indices = @transform_0, window_bounds = array<i64: 1432, 128>}, {pipeline_mode = #tpu.pipeline_mode<synchronous>, transform_indices = @transform_1, window_bounds = array<i64: 136, 128>}, {transform_indices = @transform_2, window_bounds = array<i64: 8, 128>}]} {
    %c0_i32 = arith.constant 0 : i32
    %0 = arith.cmpi eq, %arg0, %c0_i32 : i32
    %1 = arith.extui %0 : i1 to i32
    %c0_i32_0 = arith.constant 0 : i32
    %2 = arith.cmpi ne, %1, %c0_i32_0 : i32
    scf.if %2 {
      %c0_47 = arith.constant 0 : index
      %c0_48 = arith.constant 0 : index
      %96 = vector.load %arg3[%c0_47, %c0_48] : memref<136x128xf32, #tpu.memory_space<vmem>>, vector<1x128xf32>
      %c0_49 = arith.constant 0 : index
      %c0_50 = arith.constant 0 : index
      %97 = vector.load %arg5[%c0_49, %c0_50] : memref<1x128xf32, #tpu.memory_space<vmem>>, vector<1x128xf32>
      tpu.vector_store %arg5[%c0_49, %c0_50], %96 {strides = array<i32>} : memref<1x128xf32, #tpu.memory_space<vmem>>, vector<1x128xf32>,
    } else {
    }
    %c0 = arith.constant 0 : index
    %c0_1 = arith.constant 0 : index
    %3 = vector.load %arg5[%c0, %c0_1] : memref<1x128xf32, #tpu.memory_space<vmem>>, vector<1x128xf32>
    %4 = arith.index_cast %arg0 : i32 to index
    %5 = memref.load %arg1[%4] : memref<4xi32, #tpu.memory_space<smem>>
    %c0_i32_2 = arith.constant 0 : i32
    %6 = arith.maxsi %5, %c0_i32_2 : i32
    %c9_i32 = arith.constant 9 : i32
    %7 = arith.minsi %6, %c9_i32 : i32
    %8 = arith.index_cast %7 : i32 to index
    %c0_3 = arith.constant 0 : index
    %9 = vector.load %arg2[%8, %c0_3] : memref<1432x128xf32, #tpu.memory_space<vmem>>, vector<1x128xf32>
    %c16 = arith.constant 16 : index
    %c0_4 = arith.constant 0 : index
    %10 = vector.load %arg2[%c16, %c0_4] : memref<1432x128xf32, #tpu.memory_space<vmem>>, vector<128x128xf32>
    %cst = arith.constant dense<0.000000e+00> : vector<1x128xf32>
    %11 = tpu.matmul %9, %10, %cst {dimension_numbers = #tpu.dot_dimension_numbers<[1], [0], [0], [1], [0, 0, 1, 1], [], []>} : vector<1x128xf32>, vector<128x128xf32>, vector<1x128xf32> -> vector<1x128xf32>
    %c144 = arith.constant 144 : index
    %c0_5 = arith.constant 0 : index
    %12 = vector.load %arg2[%c144, %c0_5] : memref<1432x128xf32, #tpu.memory_space<vmem>>, vector<128x128xf32>
    %cst_6 = arith.constant dense<0.000000e+00> : vector<1x128xf32>
    %13 = tpu.matmul %3, %12, %cst_6 {dimension_numbers = #tpu.dot_dimension_numbers<[1], [0], [0], [1], [0, 0, 1, 1], [], []>} : vector<1x128xf32>, vector<128x128xf32>, vector<1x128xf32> -> vector<1x128xf32>
    %14 = arith.addf %11, %13 : vector<1x128xf32>
    %c1424 = arith.constant 1424 : index
    %c0_7 = arith.constant 0 : index
    %15 = vector.load %arg2[%c1424, %c0_7] : memref<1432x128xf32, #tpu.memory_space<vmem>>, vector<1x128xf32>
    %16 = arith.addf %14, %15 : vector<1x128xf32>
    %cst_8 = arith.constant dense<0xFF800000> : vector<1xf32>
    %17 = vector.multi_reduction <maximumf>, %16, %cst_8 [1] : vector<1x128xf32> to vector<1xf32>
    %18 = vector.shape_cast %17 : vector<1xf32> to vector<1x1xf32>
    %19 = vector.broadcast %18 : vector<1x1xf32> to vector<1x128xf32>
    %20 = arith.subf %16, %19 : vector<1x128xf32>
    %21 = math.exp %20 : vector<1x128xf32>
    %cst_9 = arith.constant dense<0.000000e+00> : vector<1xf32>
    %22 = vector.multi_reduction <add>, %21, %cst_9 [1] : vector<1x128xf32> to vector<1xf32>
    %23 = vector.shape_cast %22 : vector<1xf32> to vector<1x1xf32>
    %24 = tpu.reciprocal %23 : vector<1x1xf32> -> vector<1x1xf32>
    %25 = vector.broadcast %24 : vector<1x1xf32> to vector<1x128xf32>
    %26 = arith.mulf %21, %25 : vector<1x128xf32>
    %c8 = arith.constant 8 : index
    %c0_10 = arith.constant 0 : index
    %27 = vector.load %arg3[%c8, %c0_10] : memref<136x128xf32, #tpu.memory_space<vmem>>, vector<128x128xf32>
    %cst_11 = arith.constant dense<0.000000e+00> : vector<1x128xf32>
    %28 = tpu.matmul %26, %27, %cst_11 {dimension_numbers = #tpu.dot_dimension_numbers<[1], [0], [0], [1], [0, 0, 1, 1], [], []>} : vector<1x128xf32>, vector<128x128xf32>, vector<1x128xf32> -> vector<1x128xf32>
    %c272 = arith.constant 272 : index
    %c0_12 = arith.constant 0 : index
    %29 = vector.load %arg2[%c272, %c0_12] : memref<1432x128xf32, #tpu.memory_space<vmem>>, vector<128x128xf32>
    %cst_13 = arith.constant dense<0.000000e+00> : vector<1x128xf32>
    %30 = tpu.matmul %9, %29, %cst_13 {dimension_numbers = #tpu.dot_dimension_numbers<[1], [0], [0], [1], [0, 0, 1, 1], [], []>} : vector<1x128xf32>, vector<128x128xf32>, vector<1x128xf32> -> vector<1x128xf32>
    %c400 = arith.constant 400 : index
    %c0_14 = arith.constant 0 : index
    %31 = vector.load %arg2[%c400, %c0_14] : memref<1432x128xf32, #tpu.memory_space<vmem>>, vector<128x128xf32>
    %cst_15 = arith.constant dense<0.000000e+00> : vector<1x128xf32>
    %32 = tpu.matmul %28, %31, %cst_15 {dimension_numbers = #tpu.dot_dimension_numbers<[1], [0], [0], [1], [0, 0, 1, 1], [], []>} : vector<1x128xf32>, vector<128x128xf32>, vector<1x128xf32> -> vector<1x128xf32>
    %33 = arith.addf %30, %32 : vector<1x128xf32>
    %c1425 = arith.constant 1425 : index
    %c0_16 = arith.constant 0 : index
    %34 = vector.load %arg2[%c1425, %c0_16] : memref<1432x128xf32, #tpu.memory_space<vmem>>, vector<1x128xf32>
    %35 = arith.addf %33, %34 : vector<1x128xf32>
    %cst_17 = arith.constant 0.000000e+00 : f32
    %36 = vector.broadcast %cst_17 : f32 to vector<1x128xf32>
    %37 = arith.maximumf %35, %36 : vector<1x128xf32>
    %c528 = arith.constant 528 : index
    %c0_18 = arith.constant 0 : index
    %38 = vector.load %arg2[%c528, %c0_18] : memref<1432x128xf32, #tpu.memory_space<vmem>>, vector<128x128xf32>
    %cst_19 = arith.constant dense<0.000000e+00> : vector<1x128xf32>
    %39 = tpu.matmul %37, %38, %cst_19 {dimension_numbers = #tpu.dot_dimension_numbers<[1], [0], [0], [1], [0, 0, 1, 1], [], []>} : vector<1x128xf32>, vector<128x128xf32>, vector<1x128xf32> -> vector<1x128xf32>
    %c912 = arith.constant 912 : index
    %c0_20 = arith.constant 0 : index
    %40 = vector.load %arg2[%c912, %c0_20] : memref<1432x128xf32, #tpu.memory_space<vmem>>, vector<128x128xf32>
    %cst_21 = arith.constant dense<0.000000e+00> : vector<1x128xf32>
    %41 = tpu.matmul %3, %40, %cst_21 {dimension_numbers = #tpu.dot_dimension_numbers<[1], [0], [0], [1], [0, 0, 1, 1], [], []>} : vector<1x128xf32>, vector<128x128xf32>, vector<1x128xf32> -> vector<1x128xf32>
    %42 = arith.addf %39, %41 : vector<1x128xf32>
    %c1426 = arith.constant 1426 : index
    %c0_22 = arith.constant 0 : index
    %43 = vector.load %arg2[%c1426, %c0_22] : memref<1432x128xf32, #tpu.memory_space<vmem>>, vector<1x128xf32>
    %44 = arith.addf %42, %43 : vector<1x128xf32>
    %45 = arith.negf %44 : vector<1x128xf32>
    %46 = math.exp %45 : vector<1x128xf32>
    %cst_23 = arith.constant 1.000000e+00 : f32
    %47 = vector.broadcast %cst_23 : f32 to vector<1x128xf32>
    %48 = arith.addf %47, %46 : vector<1x128xf32>
    %49 = arith.divf %47, %48 : vector<1x128xf32>
    %c656 = arith.constant 656 : index
    %c0_24 = arith.constant 0 : index
    %50 = vector.load %arg2[%c656, %c0_24] : memref<1432x128xf32, #tpu.memory_space<vmem>>, vector<128x128xf32>
    %cst_25 = arith.constant dense<0.000000e+00> : vector<1x128xf32>
    %51 = tpu.matmul %37, %50, %cst_25 {dimension_numbers = #tpu.dot_dimension_numbers<[1], [0], [0], [1], [0, 0, 1, 1], [], []>} : vector<1x128xf32>, vector<128x128xf32>, vector<1x128xf32> -> vector<1x128xf32>
    %c1040 = arith.constant 1040 : index
    %c0_26 = arith.constant 0 : index
    %52 = vector.load %arg2[%c1040, %c0_26] : memref<1432x128xf32, #tpu.memory_space<vmem>>, vector<128x128xf32>
    %cst_27 = arith.constant dense<0.000000e+00> : vector<1x128xf32>
    %53 = tpu.matmul %3, %52, %cst_27 {dimension_numbers = #tpu.dot_dimension_numbers<[1], [0], [0], [1], [0, 0, 1, 1], [], []>} : vector<1x128xf32>, vector<128x128xf32>, vector<1x128xf32> -> vector<1x128xf32>
    %54 = arith.addf %51, %53 : vector<1x128xf32>
    %c1427 = arith.constant 1427 : index
    %c0_28 = arith.constant 0 : index
    %55 = vector.load %arg2[%c1427, %c0_28] : memref<1432x128xf32, #tpu.memory_space<vmem>>, vector<1x128xf32>
    %56 = arith.addf %54, %55 : vector<1x128xf32>
    %57 = arith.negf %56 : vector<1x128xf32>
    %58 = math.exp %57 : vector<1x128xf32>
    %cst_29 = arith.constant 1.000000e+00 : f32
    %59 = vector.broadcast %cst_29 : f32 to vector<1x128xf32>
    %60 = arith.addf %59, %58 : vector<1x128xf32>
    %61 = arith.divf %59, %60 : vector<1x128xf32>
    %c784 = arith.constant 784 : index
    %c0_30 = arith.constant 0 : index
    %62 = vector.load %arg2[%c784, %c0_30] : memref<1432x128xf32, #tpu.memory_space<vmem>>, vector<128x128xf32>
    %cst_31 = arith.constant dense<0.000000e+00> : vector<1x128xf32>
    %63 = tpu.matmul %37, %62, %cst_31 {dimension_numbers = #tpu.dot_dimension_numbers<[1], [0], [0], [1], [0, 0, 1, 1], [], []>} : vector<1x128xf32>, vector<128x128xf32>, vector<1x128xf32> -> vector<1x128xf32>
    %c1428 = arith.constant 1428 : index
    %c0_32 = arith.constant 0 : index
    %64 = vector.load %arg2[%c1428, %c0_32] : memref<1432x128xf32, #tpu.memory_space<vmem>>, vector<1x128xf32>
    %65 = arith.addf %63, %64 : vector<1x128xf32>
    %c1168 = arith.constant 1168 : index
    %c0_33 = arith.constant 0 : index
    %66 = vector.load %arg2[%c1168, %c0_33] : memref<1432x128xf32, #tpu.memory_space<vmem>>, vector<128x128xf32>
    %cst_34 = arith.constant dense<0.000000e+00> : vector<1x128xf32>
    %67 = tpu.matmul %3, %66, %cst_34 {dimension_numbers = #tpu.dot_dimension_numbers<[1], [0], [0], [1], [0, 0, 1, 1], [], []>} : vector<1x128xf32>, vector<128x128xf32>, vector<1x128xf32> -> vector<1x128xf32>
    %c1429 = arith.constant 1429 : index
    %c0_35 = arith.constant 0 : index
    %68 = vector.load %arg2[%c1429, %c0_35] : memref<1432x128xf32, #tpu.memory_space<vmem>>, vector<1x128xf32>
    %69 = arith.addf %67, %68 : vector<1x128xf32>
    %70 = arith.mulf %49, %69 : vector<1x128xf32>
    %71 = arith.addf %65, %70 : vector<1x128xf32>
    %72 = math.tanh %71 : vector<1x128xf32>
    %cst_36 = arith.constant 1.000000e+00 : f32
    %73 = vector.broadcast %cst_36 : f32 to vector<1x128xf32>
    %74 = arith.subf %73, %61 : vector<1x128xf32>
    %75 = arith.mulf %74, %72 : vector<1x128xf32>
    %76 = arith.mulf %61, %3 : vector<1x128xf32>
    %77 = arith.addf %75, %76 : vector<1x128xf32>
    %c0_37 = arith.constant 0 : index
    %c0_38 = arith.constant 0 : index
    %78 = vector.load %arg5[%c0_37, %c0_38] : memref<1x128xf32, #tpu.memory_space<vmem>>, vector<1x128xf32>
    tpu.vector_store %arg5[%c0_37, %c0_38], %77 {strides = array<i32>} : memref<1x128xf32, #tpu.memory_space<vmem>>, vector<1x128xf32>,
    %c1296 = arith.constant 1296 : index
    %c0_39 = arith.constant 0 : index
    %79 = vector.load %arg2[%c1296, %c0_39] : memref<1432x128xf32, #tpu.memory_space<vmem>>, vector<128x128xf32>
    %cst_40 = arith.constant dense<0.000000e+00> : vector<1x128xf32>
    %80 = tpu.matmul %77, %79, %cst_40 {dimension_numbers = #tpu.dot_dimension_numbers<[1], [0], [0], [1], [0, 0, 1, 1], [], []>} : vector<1x128xf32>, vector<128x128xf32>, vector<1x128xf32> -> vector<1x128xf32>
    %c1430 = arith.constant 1430 : index
    %c0_41 = arith.constant 0 : index
    %81 = vector.load %arg2[%c1430, %c0_41] : memref<1432x128xf32, #tpu.memory_space<vmem>>, vector<1x128xf32>
    %82 = arith.addf %80, %81 : vector<1x128xf32>
    %cst_42 = arith.constant dense<0xFF800000> : vector<1xf32>
    %83 = vector.multi_reduction <maximumf>, %82, %cst_42 [1] : vector<1x128xf32> to vector<1xf32>
    %84 = vector.shape_cast %83 : vector<1xf32> to vector<1x1xf32>
    %85 = vector.broadcast %84 : vector<1x1xf32> to vector<1x128xf32>
    %86 = arith.subf %82, %85 : vector<1x128xf32>
    %87 = math.exp %86 : vector<1x128xf32>
    %cst_43 = arith.constant dense<0.000000e+00> : vector<1xf32>
    %88 = vector.multi_reduction <add>, %87, %cst_43 [1] : vector<1x128xf32> to vector<1xf32>
    %89 = vector.shape_cast %88 : vector<1xf32> to vector<1x1xf32>
    %90 = math.log %89 : vector<1x1xf32>
    %91 = vector.broadcast %90 : vector<1x1xf32> to vector<1x128xf32>
    %92 = arith.subf %86, %91 : vector<1x128xf32>
    %cst_44 = arith.constant 0.000000e+00 : f32
    %93 = vector.broadcast %cst_44 : f32 to vector<5x128xf32>
    %94 = tpu.concatenate %92, %77, %26, %93 in 0 : vector<1x128xf32>, vector<1x128xf32>, vector<1x128xf32>, vector<5x128xf32> -> vector<8x128xf32>
    %c0_45 = arith.constant 0 : index
    %c0_46 = arith.constant 0 : index
    %95 = vector.load %arg4[%c0_45, %c0_46] : memref<8x128xf32, #tpu.memory_space<vmem>>, vector<8x128xf32>
    tpu.vector_store %arg4[%c0_45, %c0_46], %94 {strides = array<i32>} : memref<8x128xf32, #tpu.memory_space<vmem>>, vector<8x128xf32>,
    return
  }
  func.func @transform_0(%arg0: i32, %arg1: memref<4xi32, #tpu.memory_space<smem>>) -> (i32, i32) {
    %c0_i32 = arith.constant 0 : i32
    %c0_i32_0 = arith.constant 0 : i32
    %c0_i32_1 = arith.constant 0 : i32
    return %c0_i32, %c0_i32_0 : i32, i32
  }
  func.func @transform_1(%arg0: i32, %arg1: memref<4xi32, #tpu.memory_space<smem>>) -> (i32, i32) {
    %c0_i32 = arith.constant 0 : i32
    %c0_i32_0 = arith.constant 0 : i32
    %c0_i32_1 = arith.constant 0 : i32
    return %c0_i32, %c0_i32_0 : i32, i32
  }
  func.func @transform_2(%arg0: i32, %arg1: memref<4xi32, #tpu.memory_space<smem>>) -> (i32, i32) {
    %c0_i32 = arith.constant 0 : i32
    %c0_i32_0 = arith.constant 0 : i32
    return %arg0, %c0_i32 : i32, i32
  }
}

</mosaic_0001>

<llo_original>
// kernel: attn_decoder_decode.1
$region0: #{attn_decoder_decode.1}
  #allocation0 [shape = 'u32[]', space=smem, size = 0x4, offset = 0x4, fixed_abs, tag = 'smem constant byte address 0x4 - core index']
  #allocation1 [shape = 'u32[144,128]{1,0:T(1,128)}', space=vmem, size = 0x12000, scoped, tag = 'internal scratch']
  #allocation2 [shape = 'f32[1,128]{1,0:T(1,128)}', space=vmem, size = 0x200, scoped, tag = 'scratch operand']
  #allocation3 [shape = 's32[1]{0}', space=sflag, size = 0x4, scoped, tag = 'scoped memory for attn_decoder_decode.1']
  #allocation4 [shape = 'u8[512]{0}', space=smem, size = 0x200, scoped, tag = 'prefetched SMEM operand 0']
  %s0 = inlined_call_operand.vmem [shape: s32[4], index: 0, kind: input, shape index: {}]
  %s1 = inlined_call_operand.hbm [shape: f32[1432,128], index: 1, kind: input, shape index: {}]
  %s2 = inlined_call_operand.vmem [shape: f32[136,128], index: 2, kind: input, shape index: {}]
  %s3 = inlined_call_operand.vmem [shape: f32[32,128], index: 3, kind: output, shape index: {}]
  %s4 = sld [smem:[#allocation0]]
  $region49: #{attn_decoder_decode.1} parent=0
    _
  %s6 = ssub.s32 1, %s4
  %s7 = scalar_select 0, %s6, %s4
  %s8 = sshll.u32 %s0, 4
  %s9 = int_to_ptr.vmem [resolvable:$true] %s8
  %11 = dma.vmem_to_smem %s9, 16, [#allocation4], [#allocation3]
  %12 = dma.done [#allocation3], 16
  %13 = sfence
  $region1: #{attn_decoder_decode.1} parent=0
    #allocation5 [shape = 'u8[733184]{0}', space=vmem, size = 0xb3000, scoped, tag = 'input window, operand 1, single buffered']
    #allocation6 [shape = 's32[2]{0}', space=sflag, size = 0x8, scoped, tag = 'scoped memory for attn_decoder_decode.1']
    %14 = vsyncpa [#allocation6], 0
    loop: start=0, step=1, limit=6
    $region2: #{attn_decoder_decode.1} parent=1 // loop_pre_header
      _
    $region3: #{attn_decoder_decode.1} parent=1 // loop_header
      %s16 = sphi 0, %s20
      %p17 = scmp.ge.s32.totalorder %s16, 6
      %s24 = sphi 0, %s24
      %s26 = sphi 0, %s24
      %s27 = sphi 0, %s26
      %s41 = sphi 0, %s27
      %s45 = sphi 0, %s45
      %s47 = sphi 0, %s45
      %s48 = sphi 0, %s47
      %s62 = sphi 0, %s48
      %s68 = sphi 0, %s70
      %s71 = sphi 0, %s68
      %s72 = sphi 0, %s71
      %s88 = sphi 0, %s72
    $region4: #{attn_decoder_decode.1} parent=1 // loop_header_branch
      %19 = sbr.rel (%p17) target = $region8
    $region5: #{attn_decoder_decode.1} parent=1 // loop_body
      %s21 = ssub.s32 %s16, 1
      %s22 = ssub.s32 %s16, 2
      %s23 = sadd.s32 %s16, 1
      %s25 = sadd.s32 %s24, 1
      %p28 = scmp.eq.s32.totalorder %s16, 3
      %p29 = scmp.ne.s32.totalorder %s24, %s26
      %p30 = scmp.eq.s32.totalorder %s16, 0
      %p31 = por %p29, %p30
      %p32 = scmp.ne.s32.totalorder %s24, %s26
      %p33 = scmp.eq.s32.totalorder %s21, 3
      %p34 = por %p32, %p33
      %p35 = scmp.ne.s32.totalorder %s26, %s27
      %p36 = scmp.eq.s32.totalorder %s21, 0
      %p37 = por %p35, %p36
      %p38 = scmp.ne.s32.totalorder %s26, %s27
      %p39 = scmp.eq.s32.totalorder %s22, 3
      %p40 = por %p38, %p39
      %p42 = scmp.ne.s32.totalorder %s27, %s41
      %p43 = scmp.eq.s32.totalorder %s22, 0
      %p44 = por %p42, %p43
      %s46 = sadd.s32 %s45, 1
      %p49 = scmp.eq.s32.totalorder %s16, 3
      %p50 = scmp.ne.s32.totalorder %s45, %s47
      %p51 = scmp.eq.s32.totalorder %s16, 0
      %p52 = por %p50, %p51
      %p53 = scmp.ne.s32.totalorder %s45, %s47
      %p54 = scmp.eq.s32.totalorder %s21, 3
      %p55 = por %p53, %p54
      %p56 = scmp.ne.s32.totalorder %s47, %s48
      %p57 = scmp.eq.s32.totalorder %s21, 0
      %p58 = por %p56, %p57
      %p59 = scmp.ne.s32.totalorder %s47, %s48
      %p60 = scmp.eq.s32.totalorder %s22, 3
      %p61 = por %p59, %p60
      %p63 = scmp.ne.s32.totalorder %s48, %s62
      %p64 = scmp.eq.s32.totalorder %s22, 0
      %p65 = por %p63, %p64
      %s66 = ssub.s32 %s16, %s23
      %p67 = scmp.eq.s32.totalorder %s66, 0
      %s69 = sadd.s32 %s68, 1
      %s70 = scalar_select %p67, %s68, %s69
      %p73 = pneg %p67
      %p74 = scmp.eq.s32.totalorder %s16, 3
      %p75 = por %p73, %p74
      %p76 = scmp.ne.s32.totalorder %s68, %s71
      %p77 = scmp.eq.s32.totalorder %s16, 0
      %p78 = por %p76, %p77
      %p79 = scmp.ne.s32.totalorder %s68, %s71
      %p80 = scmp.eq.s32.totalorder %s21, 3
      %p81 = por %p79, %p80
      %p82 = scmp.ne.s32.totalorder %s71, %s72
      %p83 = scmp.eq.s32.totalorder %s21, 0
      %p84 = por %p82, %p83
      %p85 = scmp.ne.s32.totalorder %s71, %s72
      %p86 = scmp.eq.s32.totalorder %s22, 3
      %p87 = por %p85, %p86
      %p89 = scmp.ne.s32.totalorder %s72, %s88
      %p90 = scmp.eq.s32.totalorder %s22, 0
      %p91 = por %p89, %p90
      %p92 = scmp.le.s32.totalorder 1, %s16
      %p93 = scmp.lt.s32.totalorder %s16, 5
      %p94 = pnand %p92, %p93
      %p95 = pneg %p94
      // Predicated region
      $region9: #{attn_decoder_decode.1} parent=5 // pred_check
        _
      $region10: #{attn_decoder_decode.1} parent=5 // pred_check_branch
        %97 = sbr.rel (%p94) target = $region12
      $region11: #{attn_decoder_decode.1} parent=5 // pred_region
        %s98 = ssub.s32 %s16, 1
        // Predicated region
        $region13: #{attn_decoder_decode.1} parent=11 // pred_check
          %p99 = pneg %p37
        $region14: #{attn_decoder_decode.1} parent=11 // pred_check_branch
          %101 = sbr.rel (%p99) target = $region16
        $region15: #{attn_decoder_decode.1} parent=11 // pred_region
          %s103 = ssub.s32 22912, 22912
          %104 = vsyncadd [#allocation6], %s103
          %s105 = sshll.u32 [#allocation5], 4
          %s106 = int_to_ptr.vmem [resolvable:$true] %s105
          %111 = dma.hbm_to_vmem [thread:$0]  %s1, 22912, %s106, [#allocation6], 128, 128, 8
        $region16: #{attn_decoder_decode.1} parent=11 // pred_fallthru
          _
        // Predicated region
        $region17: #{attn_decoder_decode.1} parent=11 // pred_check
          %p112 = pneg %p58
        $region18: #{attn_decoder_decode.1} parent=11 // pred_check_branch
          %114 = sbr.rel (%p112) target = $region20
        $region19: #{attn_decoder_decode.1} parent=11 // pred_region
          _
        $region20: #{attn_decoder_decode.1} parent=11 // pred_fallthru
          _
      $region12: #{attn_decoder_decode.1} parent=5 // pred_fallthru
        _
      %p115 = scmp.lt.s32.totalorder %s16, 4
      // Predicated region
      $region21: #{attn_decoder_decode.1} parent=5 // pred_check
        %p116 = pneg %p115
      $region22: #{attn_decoder_decode.1} parent=5 // pred_check_branch
        %118 = sbr.rel (%p116) target = $region24
      $region23: #{attn_decoder_decode.1} parent=5 // pred_region
        _
      $region24: #{attn_decoder_decode.1} parent=5 // pred_fallthru
        _
      %p119 = scmp.le.s32.totalorder 1, %s16
      %p120 = scmp.lt.s32.totalorder %s16, 5
      %p121 = pnand %p119, %p120
      %p122 = pneg %p121
      // Predicated region
      $region25: #{attn_decoder_decode.1} parent=5 // pred_check
        _
      $region26: #{attn_decoder_decode.1} parent=5 // pred_check_branch
        %124 = sbr.rel (%p121) target = $region28
      $region27: #{attn_decoder_decode.1} parent=5 // pred_region
        %s125 = ssub.s32 %s16, 1
        // Predicated region
        $region29: #{attn_decoder_decode.1} parent=27 // pred_check
          %p126 = pneg %p37
        $region30: #{attn_decoder_decode.1} parent=27 // pred_check_branch
          %128 = sbr.rel (%p126) target = $region32
        $region31: #{attn_decoder_decode.1} parent=27 // pred_region
          %129 = dma.done [#allocation6], 22912
        $region32: #{attn_decoder_decode.1} parent=27 // pred_fallthru
          _
        %p130 = pneg %p37
        %p131 = pneg %p34
        %p132 = pneg %p58
        %p133 = pneg %p55
        %p134 = pneg %p84
        %p135 = pneg %p81
        %p136 = scmp.lt.s32.totalorder %s21, 3
        %s137 = scalar_select %p136, %s21, 3
        %s138 = smul.addr %s137, 8
        %s139 = scalar_lea.vmem %s3, %s138
        %p140 = scmp.lt.s32.totalorder %s21, 3
        %s141 = scalar_select %p140, %s21, 3
        %s142 = smul.addr %s141, 8
        %s143 = scalar_lea.vmem %s3, %s142
        %p144 = scmp.eq.s32.totalorder %s21, 0
        // Predicated region
        $region33: #{attn_decoder_decode.1} parent=27 // pred_check
          %p145 = pneg %p144
        $region34: #{attn_decoder_decode.1} parent=27 // pred_check_branch
          %147 = sbr.rel (%p145) target = $region36
        $region35: #{attn_decoder_decode.1} parent=27 // pred_region
          %v148 = vld [vmem:[%s2] sm:$0x1]
          %149 = vst [vmem:[#allocation2] sm:$0x1] %v148
        $region36: #{attn_decoder_decode.1} parent=27 // pred_fallthru
          _
        %v150 = vld [vmem:[#allocation2] sm:$0x1]
        %s151 = sld [smem:[#allocation4 + %s21]]
        %p152 = scmp.gt.s32.totalorder %s151, 0
        %s153 = scalar_select %p152, %s151, 0
        %p154 = scmp.lt.s32.totalorder %s153, 9
        %s155 = scalar_select %p154, %s153, 9
        %s156 = scalar_lea.vmem [#allocation5], %s155
        %v157 = vld [vmem:[%s156] sm:$0x1]
        %v158 = vld [vmem:[#allocation5 + $0x10] sm:$0xff]
        %v159 = vld [vmem:[#allocation5 + $0x18] sm:$0xff]
        %v160 = vld [vmem:[#allocation5 + $0x20] sm:$0xff]
        %v161 = vld [vmem:[#allocation5 + $0x28] sm:$0xff]
        %v162 = vld [vmem:[#allocation5 + $0x30] sm:$0xff]
        %v163 = vld [vmem:[#allocation5 + $0x38] sm:$0xff]
        %v164 = vld [vmem:[#allocation5 + $0x40] sm:$0xff]
        %v165 = vld [vmem:[#allocation5 + $0x48] sm:$0xff]
        %v166 = vld [vmem:[#allocation5 + $0x50] sm:$0xff]
        %v167 = vld [vmem:[#allocation5 + $0x58] sm:$0xff]
        %v168 = vld [vmem:[#allocation5 + $0x60] sm:$0xff]
        %v169 = vld [vmem:[#allocation5 + $0x68] sm:$0xff]
        %v170 = vld [vmem:[#allocation5 + $0x70] sm:$0xff]
        %v171 = vld [vmem:[#allocation5 + $0x78] sm:$0xff]
        %v172 = vld [vmem:[#allocation5 + $0x80] sm:$0xff]
        %v173 = vld [vmem:[#allocation5 + $0x88] sm:$0xff]
        %v174 = vld [vmem:[#allocation5 + $0x90] sm:$0xff]
        %v175 = vld [vmem:[#allocation5 + $0x98] sm:$0xff]
        %v176 = vld [vmem:[#allocation5 + $0xa0] sm:$0xff]
        %v177 = vld [vmem:[#allocation5 + $0xa8] sm:$0xff]
        %v178 = vld [vmem:[#allocation5 + $0xb0] sm:$0xff]
        %v179 = vld [vmem:[#allocation5 + $0xb8] sm:$0xff]
        %v180 = vld [vmem:[#allocation5 + $0xc0] sm:$0xff]
        %v181 = vld [vmem:[#allocation5 + $0xc8] sm:$0xff]
        %v182 = vld [vmem:[#allocation5 + $0xd0] sm:$0xff]
        %v183 = vld [vmem:[#allocation5 + $0xd8] sm:$0xff]
        %v184 = vld [vmem:[#allocation5 + $0xe0] sm:$0xff]
        %v185 = vld [vmem:[#allocation5 + $0xe8] sm:$0xff]
        %v186 = vld [vmem:[#allocation5 + $0xf0] sm:$0xff]
        %v187 = vld [vmem:[#allocation5 + $0xf8] sm:$0xff]
        %v188 = vld [vmem:[#allocation5 + $0x100] sm:$0xff]
        %v189 = vld [vmem:[#allocation5 + $0x108] sm:$0xff]
        %190 = vmatprep.subr.mxu0 0.0
        %191 = vmatpush1.msra.mxu0 %v189
        %192 = vmatprep.subr.mxu0 0.0
        %193 = vmatpush1.msra.mxu0 %v188
        %194 = vmatprep.subr.mxu0 0.0
        %195 = vmatpush1.msra.mxu0 %v187
        %196 = vmatprep.subr.mxu0 0.0
        %197 = vmatpush1.msra.mxu0 %v186
        %198 = vmatprep.subr.mxu0 0.0
        %199 = vmatpush1.msra.mxu0 %v185
        %200 = vmatprep.subr.mxu0 0.0
        %201 = vmatpush1.msra.mxu0 %v184
        %202 = vmatprep.subr.mxu0 0.0
        %203 = vmatpush1.msra.mxu0 %v183
        %204 = vmatprep.subr.mxu0 0.0
        %205 = vmatpush1.msra.mxu0 %v182
        %206 = vmatprep.subr.mxu0 0.0
        %207 = vmatpush1.msra.mxu0 %v181
        %208 = vmatprep.subr.mxu0 0.0
        %209 = vmatpush1.msra.mxu0 %v180
        %210 = vmatprep.subr.mxu0 0.0
        %211 = vmatpush1.msra.mxu0 %v179
        %212 = vmatprep.subr.mxu0 0.0
        %213 = vmatpush1.msra.mxu0 %v178
        %214 = vmatprep.subr.mxu0 0.0
        %215 = vmatpush1.msra.mxu0 %v177
        %216 = vmatprep.subr.mxu0 0.0
        %217 = vmatpush1.msra.mxu0 %v176
        %218 = vmatprep.subr.mxu0 0.0
        %219 = vmatpush1.msra.mxu0 %v175
        %220 = vmatprep.subr.mxu0 0.0
        %221 = vmatpush1.msra.mxu0 %v174
        %222 = vmatprep.subr.mxu0 0.0
        %223 = vmatpush2.msra.mxu0 0.0
        %224 = vmatprep.subr.mxu0 0.0
        %225 = vmatpush2.msra.mxu0 0.0
        %226 = vmatprep.subr.mxu0 0.0
        %227 = vmatpush2.msra.mxu0 0.0
        %228 = vmatprep.subr.mxu0 0.0
        %229 = vmatpush2.msra.mxu0 0.0
        %230 = vmatprep.subr.mxu0 0.0
        %231 = vmatpush2.msra.mxu0 0.0
        %232 = vmatprep.subr.mxu0 0.0
        %233 = vmatpush2.msra.mxu0 0.0
        %234 = vmatprep.subr.mxu0 0.0
        %235 = vmatpush2.msra.mxu0 0.0
        %236 = vmatprep.subr.mxu0 0.0
        %237 = vmatpush2.msra.mxu0 0.0
        %238 = vmatprep.subr.mxu0 0.0
        %239 = vmatpush2.msra.mxu0 0.0
        %240 = vmatprep.subr.mxu0 0.0
        %241 = vmatpush2.msra.mxu0 0.0
        %242 = vmatprep.subr.mxu0 0.0
        %243 = vmatpush2.msra.mxu0 0.0
        %244 = vmatprep.subr.mxu0 0.0
        %245 = vmatpush2.msra.mxu0 0.0
        %246 = vmatprep.subr.mxu0 0.0
        %247 = vmatpush2.msra.mxu0 0.0
        %248 = vmatprep.subr.mxu0 0.0
        %249 = vmatpush2.msra.mxu0 0.0
        %250 = vmatprep.subr.mxu0 0.0
        %251 = vmatpush2.msra.mxu0 0.0
        %252 = vmatprep.subr.mxu0 0.0
        %253 = vmatpush2.msra.mxu0 0.0
        %254 = vmatprep.mubr.f32.mxu0 0.0
        %255 = vmatmul.mubr.f32.gmra.mxu0 %v150
        %v256 = vpop.f32.mrf.mxu0
        %v257 = vadd.f32 0.0, %v256
        %v258 = vpop.f32.mrf.mxu0
        %259 = vdwg.mxu0
        %260 = vmatprep.subr.mxu0 0.0
        %261 = vmatpush1.msra.mxu0 %v173
        %262 = vmatprep.subr.mxu0 0.0
        %263 = vmatpush1.msra.mxu0 %v172
        %264 = vmatprep.subr.mxu0 0.0
        %265 = vmatpush1.msra.mxu0 %v171
        %266 = vmatprep.subr.mxu0 0.0
        %267 = vmatpush1.msra.mxu0 %v170
        %268 = vmatprep.subr.mxu0 0.0
        %269 = vmatpush1.msra.mxu0 %v169
        %270 = vmatprep.subr.mxu0 0.0
        %271 = vmatpush1.msra.mxu0 %v168
        %272 = vmatprep.subr.mxu0 0.0
        %273 = vmatpush1.msra.mxu0 %v167
        %274 = vmatprep.subr.mxu0 0.0
        %275 = vmatpush1.msra.mxu0 %v166
        %276 = vmatprep.subr.mxu0 0.0
        %277 = vmatpush1.msra.mxu0 %v165
        %278 = vmatprep.subr.mxu0 0.0
        %279 = vmatpush1.msra.mxu0 %v164
        %280 = vmatprep.subr.mxu0 0.0
        %281 = vmatpush1.msra.mxu0 %v163
        %282 = vmatprep.subr.mxu0 0.0
        %283 = vmatpush1.msra.mxu0 %v162
        %284 = vmatprep.subr.mxu0 0.0
        %285 = vmatpush1.msra.mxu0 %v161
        %286 = vmatprep.subr.mxu0 0.0
        %287 = vmatpush1.msra.mxu0 %v160
        %288 = vmatprep.subr.mxu0 0.0
        %289 = vmatpush1.msra.mxu0 %v159
        %290 = vmatprep.subr.mxu0 0.0
        %291 = vmatpush1.msra.mxu0 %v158
        %292 = vmatprep.subr.mxu0 0.0
        %293 = vmatpush2.msra.mxu0 0.0
        %294 = vmatprep.subr.mxu0 0.0
        %295 = vmatpush2.msra.mxu0 0.0
        %296 = vmatprep.subr.mxu0 0.0
        %297 = vmatpush2.msra.mxu0 0.0
        %298 = vmatprep.subr.mxu0 0.0
        %299 = vmatpush2.msra.mxu0 0.0
        %300 = vmatprep.subr.mxu0 0.0
        %301 = vmatpush2.msra.mxu0 0.0
        %302 = vmatprep.subr.mxu0 0.0
        %303 = vmatpush2.msra.mxu0 0.0
        %304 = vmatprep.subr.mxu0 0.0
        %305 = vmatpush2.msra.mxu0 0.0
        %306 = vmatprep.subr.mxu0 0.0
        %307 = vmatpush2.msra.mxu0 0.0
        %308 = vmatprep.subr.mxu0 0.0
        %309 = vmatpush2.msra.mxu0 0.0
        %310 = vmatprep.subr.mxu0 0.0
        %311 = vmatpush2.msra.mxu0 0.0
        %312 = vmatprep.subr.mxu0 0.0
        %313 = vmatpush2.msra.mxu0 0.0
        %314 = vmatprep.subr.mxu0 0.0
        %315 = vmatpush2.msra.mxu0 0.0
        %316 = vmatprep.subr.mxu0 0.0
        %317 = vmatpush2.msra.mxu0 0.0
        %318 = vmatprep.subr.mxu0 0.0
        %319 = vmatpush2.msra.mxu0 0.0
        %320 = vmatprep.subr.mxu0 0.0
        %321 = vmatpush2.msra.mxu0 0.0
        %322 = vmatprep.subr.mxu0 0.0
        %323 = vmatpush2.msra.mxu0 0.0
        %324 = vmatprep.mubr.f32.mxu0 0.0
        %325 = vmatmul.mubr.f32.gmra.mxu0 %v157
        %v326 = vpop.f32.mrf.mxu0
        %v327 = vadd.f32 %v257, %v326
        %v328 = vpop.f32.mrf.mxu0
        %329 = vdwg.mxu0
        %v330 = vld [vmem:[#allocation5 + $0x590] sm:$0x1]
        %v331 = vadd.f32 %v327, %v330
        %vm332 = vcmask 1040384
        %v333 = vsel %vm332, %v331, -inf
        %334 = vmax.xlane.f32.xlu0 %v333
        %v335 = vpop.xlane.xlu0 %334
        %v336 = vsub.f32 %v331, %v335
        %v337 = vmul.f32 %v336, 1.442695
        %v338 = vpow.pop %v337
        %v339 = vsel %vm332, %v338, 0.0
        %340 = vadd.xlane.f32.xlu0 %v339
        %v341 = vpop.xlane.xlu0 %340
        %v342 = vrcp.pop %v341
        %v343 = vmul.f32 %v338, %v342
        %v344 = vld [vmem:[%s2 + $0x8] sm:$0xff]
        %v345 = vld [vmem:[%s2 + $0x10] sm:$0xff]
        %v346 = vld [vmem:[%s2 + $0x18] sm:$0xff]
        %v347 = vld [vmem:[%s2 + $0x20] sm:$0xff]
        %v348 = vld [vmem:[%s2 + $0x28] sm:$0xff]
        %v349 = vld [vmem:[%s2 + $0x30] sm:$0xff]
        %v350 = vld [vmem:[%s2 + $0x38] sm:$0xff]
        %v351 = vld [vmem:[%s2 + $0x40] sm:$0xff]
        %v352 = vld [vmem:[%s2 + $0x48] sm:$0xff]
        %v353 = vld [vmem:[%s2 + $0x50] sm:$0xff]
        %v354 = vld [vmem:[%s2 + $0x58] sm:$0xff]
        %v355 = vld [vmem:[%s2 + $0x60] sm:$0xff]
        %v356 = vld [vmem:[%s2 + $0x68] sm:$0xff]
        %v357 = vld [vmem:[%s2 + $0x70] sm:$0xff]
        %v358 = vld [vmem:[%s2 + $0x78] sm:$0xff]
        %v359 = vld [vmem:[%s2 + $0x80] sm:$0xff]
        %360 = vmatprep.subr.mxu0 0.0
        %361 = vmatpush1.msra.mxu0 %v359
        %362 = vmatprep.subr.mxu0 0.0
        %363 = vmatpush1.msra.mxu0 %v358
        %364 = vmatprep.subr.mxu0 0.0
        %365 = vmatpush1.msra.mxu0 %v357
        %366 = vmatprep.subr.mxu0 0.0
        %367 = vmatpush1.msra.mxu0 %v356
        %368 = vmatprep.subr.mxu0 0.0
        %369 = vmatpush1.msra.mxu0 %v355
        %370 = vmatprep.subr.mxu0 0.0
        %371 = vmatpush1.msra.mxu0 %v354
        %372 = vmatprep.subr.mxu0 0.0
        %373 = vmatpush1.msra.mxu0 %v353
        %374 = vmatprep.subr.mxu0 0.0
        %375 = vmatpush1.msra.mxu0 %v352
        %376 = vmatprep.subr.mxu0 0.0
        %377 = vmatpush1.msra.mxu0 %v351
        %378 = vmatprep.subr.mxu0 0.0
        %379 = vmatpush1.msra.mxu0 %v350
        %380 = vmatprep.subr.mxu0 0.0
        %381 = vmatpush1.msra.mxu0 %v349
        %382 = vmatprep.subr.mxu0 0.0
        %383 = vmatpush1.msra.mxu0 %v348
        %384 = vmatprep.subr.mxu0 0.0
        %385 = vmatpush1.msra.mxu0 %v347
        %386 = vmatprep.subr.mxu0 0.0
        %387 = vmatpush1.msra.mxu0 %v346
        %388 = vmatprep.subr.mxu0 0.0
        %389 = vmatpush1.msra.mxu0 %v345
        %390 = vmatprep.subr.mxu0 0.0
        %391 = vmatpush1.msra.mxu0 %v344
        %392 = vmatprep.subr.mxu0 0.0
        %393 = vmatpush2.msra.mxu0 0.0
        %394 = vmatprep.subr.mxu0 0.0
        %395 = vmatpush2.msra.mxu0 0.0
        %396 = vmatprep.subr.mxu0 0.0
        %397 = vmatpush2.msra.mxu0 0.0
        %398 = vmatprep.subr.mxu0 0.0
        %399 = vmatpush2.msra.mxu0 0.0
        %400 = vmatprep.subr.mxu0 0.0
        %401 = vmatpush2.msra.mxu0 0.0
        %402 = vmatprep.subr.mxu0 0.0
        %403 = vmatpush2.msra.mxu0 0.0
        %404 = vmatprep.subr.mxu0 0.0
        %405 = vmatpush2.msra.mxu0 0.0
        %406 = vmatprep.subr.mxu0 0.0
        %407 = vmatpush2.msra.mxu0 0.0
        %408 = vmatprep.subr.mxu0 0.0
        %409 = vmatpush2.msra.mxu0 0.0
        %410 = vmatprep.subr.mxu0 0.0
        %411 = vmatpush2.msra.mxu0 0.0
        %412 = vmatprep.subr.mxu0 0.0
        %413 = vmatpush2.msra.mxu0 0.0
        %414 = vmatprep.subr.mxu0 0.0
        %415 = vmatpush2.msra.mxu0 0.0
        %416 = vmatprep.subr.mxu0 0.0
        %417 = vmatpush2.msra.mxu0 0.0
        %418 = vmatprep.subr.mxu0 0.0
        %419 = vmatpush2.msra.mxu0 0.0
        %420 = vmatprep.subr.mxu0 0.0
        %421 = vmatpush2.msra.mxu0 0.0
        %422 = vmatprep.subr.mxu0 0.0
        %423 = vmatpush2.msra.mxu0 0.0
        %424 = vmatprep.mubr.f32.mxu0 0.0
        %425 = vmatmul.mubr.f32.gmra.mxu0 %v343
        %v426 = vpop.f32.mrf.mxu0
        %v427 = vadd.f32 0.0, %v426
        %v428 = vpop.f32.mrf.mxu0
        %429 = vdwg.mxu0
        %v430 = vld [vmem:[#allocation5 + $0x110] sm:$0xff]
        %v431 = vld [vmem:[#allocation5 + $0x118] sm:$0xff]
        %v432 = vld [vmem:[#allocation5 + $0x120] sm:$0xff]
        %v433 = vld [vmem:[#allocation5 + $0x128] sm:$0xff]
        %v434 = vld [vmem:[#allocation5 + $0x130] sm:$0xff]
        %v435 = vld [vmem:[#allocation5 + $0x138] sm:$0xff]
        %v436 = vld [vmem:[#allocation5 + $0x140] sm:$0xff]
        %v437 = vld [vmem:[#allocation5 + $0x148] sm:$0xff]
        %v438 = vld [vmem:[#allocation5 + $0x150] sm:$0xff]
        %v439 = vld [vmem:[#allocation5 + $0x158] sm:$0xff]
        %v440 = vld [vmem:[#allocation5 + $0x160] sm:$0xff]
        %v441 = vld [vmem:[#allocation5 + $0x168] sm:$0xff]
        %v442 = vld [vmem:[#allocation5 + $0x170] sm:$0xff]
        %v443 = vld [vmem:[#allocation5 + $0x178] sm:$0xff]
        %v444 = vld [vmem:[#allocation5 + $0x180] sm:$0xff]
        %v445 = vld [vmem:[#allocation5 + $0x188] sm:$0xff]
        %v446 = vld [vmem:[#allocation5 + $0x190] sm:$0xff]
        %v447 = vld [vmem:[#allocation5 + $0x198] sm:$0xff]
        %v448 = vld [vmem:[#allocation5 + $0x1a0] sm:$0xff]
        %v449 = vld [vmem:[#allocation5 + $0x1a8] sm:$0xff]
        %v450 = vld [vmem:[#allocation5 + $0x1b0] sm:$0xff]
        %v451 = vld [vmem:[#allocation5 + $0x1b8] sm:$0xff]
        %v452 = vld [vmem:[#allocation5 + $0x1c0] sm:$0xff]
        %v453 = vld [vmem:[#allocation5 + $0x1c8] sm:$0xff]
        %v454 = vld [vmem:[#allocation5 + $0x1d0] sm:$0xff]
        %v455 = vld [vmem:[#allocation5 + $0x1d8] sm:$0xff]
        %v456 = vld [vmem:[#allocation5 + $0x1e0] sm:$0xff]
        %v457 = vld [vmem:[#allocation5 + $0x1e8] sm:$0xff]
        %v458 = vld [vmem:[#allocation5 + $0x1f0] sm:$0xff]
        %v459 = vld [vmem:[#allocation5 + $0x1f8] sm:$0xff]
        %v460 = vld [vmem:[#allocation5 + $0x200] sm:$0xff]
        %v461 = vld [vmem:[#allocation5 + $0x208] sm:$0xff]
        %462 = vmatprep.subr.mxu0 0.0
        %463 = vmatpush1.msra.mxu0 %v461
        %464 = vmatprep.subr.mxu0 0.0
        %465 = vmatpush1.msra.mxu0 %v460
        %466 = vmatprep.subr.mxu0 0.0
        %467 = vmatpush1.msra.mxu0 %v459
        %468 = vmatprep.subr.mxu0 0.0
        %469 = vmatpush1.msra.mxu0 %v458
        %470 = vmatprep.subr.mxu0 0.0
        %471 = vmatpush1.msra.mxu0 %v457
        %472 = vmatprep.subr.mxu0 0.0
        %473 = vmatpush1.msra.mxu0 %v456
        %474 = vmatprep.subr.mxu0 0.0
        %475 = vmatpush1.msra.mxu0 %v455
        %476 = vmatprep.subr.mxu0 0.0
        %477 = vmatpush1.msra.mxu0 %v454
        %478 = vmatprep.subr.mxu0 0.0
        %479 = vmatpush1.msra.mxu0 %v453
        %480 = vmatprep.subr.mxu0 0.0
        %481 = vmatpush1.msra.mxu0 %v452
        %482 = vmatprep.subr.mxu0 0.0
        %483 = vmatpush1.msra.mxu0 %v451
        %484 = vmatprep.subr.mxu0 0.0
        %485 = vmatpush1.msra.mxu0 %v450
        %486 = vmatprep.subr.mxu0 0.0
        %487 = vmatpush1.msra.mxu0 %v449
        %488 = vmatprep.subr.mxu0 0.0
        %489 = vmatpush1.msra.mxu0 %v448
        %490 = vmatprep.subr.mxu0 0.0
        %491 = vmatpush1.msra.mxu0 %v447
        %492 = vmatprep.subr.mxu0 0.0
        %493 = vmatpush1.msra.mxu0 %v446
        %494 = vmatprep.subr.mxu0 0.0
        %495 = vmatpush2.msra.mxu0 0.0
        %496 = vmatprep.subr.mxu0 0.0
        %497 = vmatpush2.msra.mxu0 0.0
        %498 = vmatprep.subr.mxu0 0.0
        %499 = vmatpush2.msra.mxu0 0.0
        %500 = vmatprep.subr.mxu0 0.0
        %501 = vmatpush2.msra.mxu0 0.0
        %502 = vmatprep.subr.mxu0 0.0
        %503 = vmatpush2.msra.mxu0 0.0
        %504 = vmatprep.subr.mxu0 0.0
        %505 = vmatpush2.msra.mxu0 0.0
        %506 = vmatprep.subr.mxu0 0.0
        %507 = vmatpush2.msra.mxu0 0.0
        %508 = vmatprep.subr.mxu0 0.0
        %509 = vmatpush2.msra.mxu0 0.0
        %510 = vmatprep.subr.mxu0 0.0
        %511 = vmatpush2.msra.mxu0 0.0
        %512 = vmatprep.subr.mxu0 0.0
        %513 = vmatpush2.msra.mxu0 0.0
        %514 = vmatprep.subr.mxu0 0.0
        %515 = vmatpush2.msra.mxu0 0.0
        %516 = vmatprep.subr.mxu0 0.0
        %517 = vmatpush2.msra.mxu0 0.0
        %518 = vmatprep.subr.mxu0 0.0
        %519 = vmatpush2.msra.mxu0 0.0
        %520 = vmatprep.subr.mxu0 0.0
        %521 = vmatpush2.msra.mxu0 0.0
        %522 = vmatprep.subr.mxu0 0.0
        %523 = vmatpush2.msra.mxu0 0.0
        %524 = vmatprep.subr.mxu0 0.0
        %525 = vmatpush2.msra.mxu0 0.0
        %526 = vmatprep.mubr.f32.mxu0 0.0
        %527 = vmatmul.mubr.f32.gmra.mxu0 %v427
        %v528 = vpop.f32.mrf.mxu0
        %v529 = vadd.f32 0.0, %v528
        %v530 = vpop.f32.mrf.mxu0
        %531 = vdwg.mxu0
        %532 = vmatprep.subr.mxu0 0.0
        %533 = vmatpush1.msra.mxu0 %v445
        %534 = vmatprep.subr.mxu0 0.0
        %535 = vmatpush1.msra.mxu0 %v444
        %536 = vmatprep.subr.mxu0 0.0
        %537 = vmatpush1.msra.mxu0 %v443
        %538 = vmatprep.subr.mxu0 0.0
        %539 = vmatpush1.msra.mxu0 %v442
        %540 = vmatprep.subr.mxu0 0.0
        %541 = vmatpush1.msra.mxu0 %v441
        %542 = vmatprep.subr.mxu0 0.0
        %543 = vmatpush1.msra.mxu0 %v440
        %544 = vmatprep.subr.mxu0 0.0
        %545 = vmatpush1.msra.mxu0 %v439
        %546 = vmatprep.subr.mxu0 0.0
        %547 = vmatpush1.msra.mxu0 %v438
        %548 = vmatprep.subr.mxu0 0.0
        %549 = vmatpush1.msra.mxu0 %v437
        %550 = vmatprep.subr.mxu0 0.0
        %551 = vmatpush1.msra.mxu0 %v436
        %552 = vmatprep.subr.mxu0 0.0
        %553 = vmatpush1.msra.mxu0 %v435
        %554 = vmatprep.subr.mxu0 0.0
        %555 = vmatpush1.msra.mxu0 %v434
        %556 = vmatprep.subr.mxu0 0.0
        %557 = vmatpush1.msra.mxu0 %v433
        %558 = vmatprep.subr.mxu0 0.0
        %559 = vmatpush1.msra.mxu0 %v432
        %560 = vmatprep.subr.mxu0 0.0
        %561 = vmatpush1.msra.mxu0 %v431
        %562 = vmatprep.subr.mxu0 0.0
        %563 = vmatpush1.msra.mxu0 %v430
        %564 = vmatprep.subr.mxu0 0.0
        %565 = vmatpush2.msra.mxu0 0.0
        %566 = vmatprep.subr.mxu0 0.0
        %567 = vmatpush2.msra.mxu0 0.0
        %568 = vmatprep.subr.mxu0 0.0
        %569 = vmatpush2.msra.mxu0 0.0
        %570 = vmatprep.subr.mxu0 0.0
        %571 = vmatpush2.msra.mxu0 0.0
        %572 = vmatprep.subr.mxu0 0.0
        %573 = vmatpush2.msra.mxu0 0.0
        %574 = vmatprep.subr.mxu0 0.0
        %575 = vmatpush2.msra.mxu0 0.0
        %576 = vmatprep.subr.mxu0 0.0
        %577 = vmatpush2.msra.mxu0 0.0
        %578 = vmatprep.subr.mxu0 0.0
        %579 = vmatpush2.msra.mxu0 0.0
        %580 = vmatprep.subr.mxu0 0.0
        %581 = vmatpush2.msra.mxu0 0.0
        %582 = vmatprep.subr.mxu0 0.0
        %583 = vmatpush2.msra.mxu0 0.0
        %584 = vmatprep.subr.mxu0 0.0
        %585 = vmatpush2.msra.mxu0 0.0
        %586 = vmatprep.subr.mxu0 0.0
        %587 = vmatpush2.msra.mxu0 0.0
        %588 = vmatprep.subr.mxu0 0.0
        %589 = vmatpush2.msra.mxu0 0.0
        %590 = vmatprep.subr.mxu0 0.0
        %591 = vmatpush2.msra.mxu0 0.0
        %592 = vmatprep.subr.mxu0 0.0
        %593 = vmatpush2.msra.mxu0 0.0
        %594 = vmatprep.subr.mxu0 0.0
        %595 = vmatpush2.msra.mxu0 0.0
        %596 = vmatprep.mubr.f32.mxu0 0.0
        %597 = vmatmul.mubr.f32.gmra.mxu0 %v157
        %v598 = vpop.f32.mrf.mxu0
        %v599 = vadd.f32 %v529, %v598
        %v600 = vpop.f32.mrf.mxu0
        %601 = vdwg.mxu0
        %v602 = vld [vmem:[#allocation5 + $0x591] sm:$0x1]
        %v603 = vadd.f32 %v599, %v602
        %v604 = vmax.f32 %v603, 0.0
        %v605 = vld [vmem:[#allocation5 + $0x210] sm:$0xff]
        %v606 = vld [vmem:[#allocation5 + $0x218] sm:$0xff]
        %v607 = vld [vmem:[#allocation5 + $0x220] sm:$0xff]
        %v608 = vld [vmem:[#allocation5 + $0x228] sm:$0xff]
        %v609 = vld [vmem:[#allocation5 + $0x230] sm:$0xff]
        %v610 = vld [vmem:[#allocation5 + $0x238] sm:$0xff]
        %v611 = vld [vmem:[#allocation5 + $0x240] sm:$0xff]
        %v612 = vld [vmem:[#allocation5 + $0x248] sm:$0xff]
        %v613 = vld [vmem:[#allocation5 + $0x250] sm:$0xff]
        %v614 = vld [vmem:[#allocation5 + $0x258] sm:$0xff]
        %v615 = vld [vmem:[#allocation5 + $0x260] sm:$0xff]
        %v616 = vld [vmem:[#allocation5 + $0x268] sm:$0xff]
        %v617 = vld [vmem:[#allocation5 + $0x270] sm:$0xff]
        %v618 = vld [vmem:[#allocation5 + $0x278] sm:$0xff]
        %v619 = vld [vmem:[#allocation5 + $0x280] sm:$0xff]
        %v620 = vld [vmem:[#allocation5 + $0x288] sm:$0xff]
        %v621 = vld [vmem:[#allocation5 + $0x390] sm:$0xff]
        %v622 = vld [vmem:[#allocation5 + $0x398] sm:$0xff]
        %v623 = vld [vmem:[#allocation5 + $0x3a0] sm:$0xff]
        %v624 = vld [vmem:[#allocation5 + $0x3a8] sm:$0xff]
        %v625 = vld [vmem:[#allocation5 + $0x3b0] sm:$0xff]
        %v626 = vld [vmem:[#allocation5 + $0x3b8] sm:$0xff]
        %v627 = vld [vmem:[#allocation5 + $0x3c0] sm:$0xff]
        %v628 = vld [vmem:[#allocation5 + $0x3c8] sm:$0xff]
        %v629 = vld [vmem:[#allocation5 + $0x3d0] sm:$0xff]
        %v630 = vld [vmem:[#allocation5 + $0x3d8] sm:$0xff]
        %v631 = vld [vmem:[#allocation5 + $0x3e0] sm:$0xff]
        %v632 = vld [vmem:[#allocation5 + $0x3e8] sm:$0xff]
        %v633 = vld [vmem:[#allocation5 + $0x3f0] sm:$0xff]
        %v634 = vld [vmem:[#allocation5 + $0x3f8] sm:$0xff]
        %v635 = vld [vmem:[#allocation5 + $0x400] sm:$0xff]
        %v636 = vld [vmem:[#allocation5 + $0x408] sm:$0xff]
        %637 = vmatprep.subr.mxu0 0.0
        %638 = vmatpush1.msra.mxu0 %v636
        %639 = vmatprep.subr.mxu0 0.0
        %640 = vmatpush1.msra.mxu0 %v635
        %641 = vmatprep.subr.mxu0 0.0
        %642 = vmatpush1.msra.mxu0 %v634
        %643 = vmatprep.subr.mxu0 0.0
        %644 = vmatpush1.msra.mxu0 %v633
        %645 = vmatprep.subr.mxu0 0.0
        %646 = vmatpush1.msra.mxu0 %v632
        %647 = vmatprep.subr.mxu0 0.0
        %648 = vmatpush1.msra.mxu0 %v631
        %649 = vmatprep.subr.mxu0 0.0
        %650 = vmatpush1.msra.mxu0 %v630
        %651 = vmatprep.subr.mxu0 0.0
        %652 = vmatpush1.msra.mxu0 %v629
        %653 = vmatprep.subr.mxu0 0.0
        %654 = vmatpush1.msra.mxu0 %v628
        %655 = vmatprep.subr.mxu0 0.0
        %656 = vmatpush1.msra.mxu0 %v627
        %657 = vmatprep.subr.mxu0 0.0
        %658 = vmatpush1.msra.mxu0 %v626
        %659 = vmatprep.subr.mxu0 0.0
        %660 = vmatpush1.msra.mxu0 %v625
        %661 = vmatprep.subr.mxu0 0.0
        %662 = vmatpush1.msra.mxu0 %v624
        %663 = vmatprep.subr.mxu0 0.0
        %664 = vmatpush1.msra.mxu0 %v623
        %665 = vmatprep.subr.mxu0 0.0
        %666 = vmatpush1.msra.mxu0 %v622
        %667 = vmatprep.subr.mxu0 0.0
        %668 = vmatpush1.msra.mxu0 %v621
        %669 = vmatprep.subr.mxu0 0.0
        %670 = vmatpush2.msra.mxu0 0.0
        %671 = vmatprep.subr.mxu0 0.0
        %672 = vmatpush2.msra.mxu0 0.0
        %673 = vmatprep.subr.mxu0 0.0
        %674 = vmatpush2.msra.mxu0 0.0
        %675 = vmatprep.subr.mxu0 0.0
        %676 = vmatpush2.msra.mxu0 0.0
        %677 = vmatprep.subr.mxu0 0.0
        %678 = vmatpush2.msra.mxu0 0.0
        %679 = vmatprep.subr.mxu0 0.0
        %680 = vmatpush2.msra.mxu0 0.0
        %681 = vmatprep.subr.mxu0 0.0
        %682 = vmatpush2.msra.mxu0 0.0
        %683 = vmatprep.subr.mxu0 0.0
        %684 = vmatpush2.msra.mxu0 0.0
        %685 = vmatprep.subr.mxu0 0.0
        %686 = vmatpush2.msra.mxu0 0.0
        %687 = vmatprep.subr.mxu0 0.0
        %688 = vmatpush2.msra.mxu0 0.0
        %689 = vmatprep.subr.mxu0 0.0
        %690 = vmatpush2.msra.mxu0 0.0
        %691 = vmatprep.subr.mxu0 0.0
        %692 = vmatpush2.msra.mxu0 0.0
        %693 = vmatprep.subr.mxu0 0.0
        %694 = vmatpush2.msra.mxu0 0.0
        %695 = vmatprep.subr.mxu0 0.0
        %696 = vmatpush2.msra.mxu0 0.0
        %697 = vmatprep.subr.mxu0 0.0
        %698 = vmatpush2.msra.mxu0 0.0
        %699 = vmatprep.subr.mxu0 0.0
        %700 = vmatpush2.msra.mxu0 0.0
        %701 = vmatprep.mubr.f32.mxu0 0.0
        %702 = vmatmul.mubr.f32.gmra.mxu0 %v150
        %v703 = vpop.f32.mrf.mxu0
        %v704 = vadd.f32 0.0, %v703
        %v705 = vpop.f32.mrf.mxu0
        %706 = vdwg.mxu0
        %707 = vmatprep.subr.mxu0 0.0
        %708 = vmatpush1.msra.mxu0 %v620
        %709 = vmatprep.subr.mxu0 0.0
        %710 = vmatpush1.msra.mxu0 %v619
        %711 = vmatprep.subr.mxu0 0.0
        %712 = vmatpush1.msra.mxu0 %v618
        %713 = vmatprep.subr.mxu0 0.0
        %714 = vmatpush1.msra.mxu0 %v617
        %715 = vmatprep.subr.mxu0 0.0
        %716 = vmatpush1.msra.mxu0 %v616
        %717 = vmatprep.subr.mxu0 0.0
        %718 = vmatpush1.msra.mxu0 %v615
        %719 = vmatprep.subr.mxu0 0.0
        %720 = vmatpush1.msra.mxu0 %v614
        %721 = vmatprep.subr.mxu0 0.0
        %722 = vmatpush1.msra.mxu0 %v613
        %723 = vmatprep.subr.mxu0 0.0
        %724 = vmatpush1.msra.mxu0 %v612
        %725 = vmatprep.subr.mxu0 0.0
        %726 = vmatpush1.msra.mxu0 %v611
        %727 = vmatprep.subr.mxu0 0.0
        %728 = vmatpush1.msra.mxu0 %v610
        %729 = vmatprep.subr.mxu0 0.0
        %730 = vmatpush1.msra.mxu0 %v609
        %731 = vmatprep.subr.mxu0 0.0
        %732 = vmatpush1.msra.mxu0 %v608
        %733 = vmatprep.subr.mxu0 0.0
        %734 = vmatpush1.msra.mxu0 %v607
        %735 = vmatprep.subr.mxu0 0.0
        %736 = vmatpush1.msra.mxu0 %v606
        %737 = vmatprep.subr.mxu0 0.0
        %738 = vmatpush1.msra.mxu0 %v605
        %739 = vmatprep.subr.mxu0 0.0
        %740 = vmatpush2.msra.mxu0 0.0
        %741 = vmatprep.subr.mxu0 0.0
        %742 = vmatpush2.msra.mxu0 0.0
        %743 = vmatprep.subr.mxu0 0.0
        %744 = vmatpush2.msra.mxu0 0.0
        %745 = vmatprep.subr.mxu0 0.0
        %746 = vmatpush2.msra.mxu0 0.0
        %747 = vmatprep.subr.mxu0 0.0
        %748 = vmatpush2.msra.mxu0 0.0
        %749 = vmatprep.subr.mxu0 0.0
        %750 = vmatpush2.msra.mxu0 0.0
        %751 = vmatprep.subr.mxu0 0.0
        %752 = vmatpush2.msra.mxu0 0.0
        %753 = vmatprep.subr.mxu0 0.0
        %754 = vmatpush2.msra.mxu0 0.0
        %755 = vmatprep.subr.mxu0 0.0
        %756 = vmatpush2.msra.mxu0 0.0
        %757 = vmatprep.subr.mxu0 0.0
        %758 = vmatpush2.msra.mxu0 0.0
        %759 = vmatprep.subr.mxu0 0.0
        %760 = vmatpush2.msra.mxu0 0.0
        %761 = vmatprep.subr.mxu0 0.0
        %762 = vmatpush2.msra.mxu0 0.0
        %763 = vmatprep.subr.mxu0 0.0
        %764 = vmatpush2.msra.mxu0 0.0
        %765 = vmatprep.subr.mxu0 0.0
        %766 = vmatpush2.msra.mxu0 0.0
        %767 = vmatprep.subr.mxu0 0.0
        %768 = vmatpush2.msra.mxu0 0.0
        %769 = vmatprep.subr.mxu0 0.0
        %770 = vmatpush2.msra.mxu0 0.0
        %771 = vmatprep.mubr.f32.mxu0 0.0
        %772 = vmatmul.mubr.f32.gmra.mxu0 %v604
        %v773 = vpop.f32.mrf.mxu0
        %v774 = vadd.f32 %v704, %v773
        %v775 = vpop.f32.mrf.mxu0
        %776 = vdwg.mxu0
        %v777 = vld [vmem:[#allocation5 + $0x592] sm:$0x1]
        %v778 = vadd.f32 %v774, %v777
        %v779 = vxor.u32 %v778, 2147483648
        %v780 = vmul.f32 %v779, 1.442695
        %v781 = vpow.pop %v780
        %v782 = vadd.f32 %v781, 1.0
        %v783 = vrcp.pop %v782
        %v784 = vmul.f32 1.0, %v783
        %v785 = vld [vmem:[#allocation5 + $0x290] sm:$0xff]
        %v786 = vld [vmem:[#allocation5 + $0x298] sm:$0xff]
        %v787 = vld [vmem:[#allocation5 + $0x2a0] sm:$0xff]
        %v788 = vld [vmem:[#allocation5 + $0x2a8] sm:$0xff]
        %v789 = vld [vmem:[#allocation5 + $0x2b0] sm:$0xff]
        %v790 = vld [vmem:[#allocation5 + $0x2b8] sm:$0xff]
        %v791 = vld [vmem:[#allocation5 + $0x2c0] sm:$0xff]
        %v792 = vld [vmem:[#allocation5 + $0x2c8] sm:$0xff]
        %v793 = vld [vmem:[#allocation5 + $0x2d0] sm:$0xff]
        %v794 = vld [vmem:[#allocation5 + $0x2d8] sm:$0xff]
        %v795 = vld [vmem:[#allocation5 + $0x2e0] sm:$0xff]
        %v796 = vld [vmem:[#allocation5 + $0x2e8] sm:$0xff]
        %v797 = vld [vmem:[#allocation5 + $0x2f0] sm:$0xff]
        %v798 = vld [vmem:[#allocation5 + $0x2f8] sm:$0xff]
        %v799 = vld [vmem:[#allocation5 + $0x300] sm:$0xff]
        %v800 = vld [vmem:[#allocation5 + $0x308] sm:$0xff]
        %v801 = vld [vmem:[#allocation5 + $0x410] sm:$0xff]
        %v802 = vld [vmem:[#allocation5 + $0x418] sm:$0xff]
        %v803 = vld [vmem:[#allocation5 + $0x420] sm:$0xff]
        %v804 = vld [vmem:[#allocation5 + $0x428] sm:$0xff]
        %v805 = vld [vmem:[#allocation5 + $0x430] sm:$0xff]
        %v806 = vld [vmem:[#allocation5 + $0x438] sm:$0xff]
        %v807 = vld [vmem:[#allocation5 + $0x440] sm:$0xff]
        %v808 = vld [vmem:[#allocation5 + $0x448] sm:$0xff]
        %v809 = vld [vmem:[#allocation5 + $0x450] sm:$0xff]
        %v810 = vld [vmem:[#allocation5 + $0x458] sm:$0xff]
        %v811 = vld [vmem:[#allocation5 + $0x460] sm:$0xff]
        %v812 = vld [vmem:[#allocation5 + $0x468] sm:$0xff]
        %v813 = vld [vmem:[#allocation5 + $0x470] sm:$0xff]
        %v814 = vld [vmem:[#allocation5 + $0x478] sm:$0xff]
        %v815 = vld [vmem:[#allocation5 + $0x480] sm:$0xff]
        %v816 = vld [vmem:[#allocation5 + $0x488] sm:$0xff]
        %817 = vmatprep.subr.mxu0 0.0
        %818 = vmatpush1.msra.mxu0 %v816
        %819 = vmatprep.subr.mxu0 0.0
        %820 = vmatpush1.msra.mxu0 %v815
        %821 = vmatprep.subr.mxu0 0.0
        %822 = vmatpush1.msra.mxu0 %v814
        %823 = vmatprep.subr.mxu0 0.0
        %824 = vmatpush1.msra.mxu0 %v813
        %825 = vmatprep.subr.mxu0 0.0
        %826 = vmatpush1.msra.mxu0 %v812
        %827 = vmatprep.subr.mxu0 0.0
        %828 = vmatpush1.msra.mxu0 %v811
        %829 = vmatprep.subr.mxu0 0.0
        %830 = vmatpush1.msra.mxu0 %v810
        %831 = vmatprep.subr.mxu0 0.0
        %832 = vmatpush1.msra.mxu0 %v809
        %833 = vmatprep.subr.mxu0 0.0
        %834 = vmatpush1.msra.mxu0 %v808
        %835 = vmatprep.subr.mxu0 0.0
        %836 = vmatpush1.msra.mxu0 %v807
        %837 = vmatprep.subr.mxu0 0.0
        %838 = vmatpush1.msra.mxu0 %v806
        %839 = vmatprep.subr.mxu0 0.0
        %840 = vmatpush1.msra.mxu0 %v805
        %841 = vmatprep.subr.mxu0 0.0
        %842 = vmatpush1.msra.mxu0 %v804
        %843 = vmatprep.subr.mxu0 0.0
        %844 = vmatpush1.msra.mxu0 %v803
        %845 = vmatprep.subr.mxu0 0.0
        %846 = vmatpush1.msra.mxu0 %v802
        %847 = vmatprep.subr.mxu0 0.0
        %848 = vmatpush1.msra.mxu0 %v801
        %849 = vmatprep.subr.mxu0 0.0
        %850 = vmatpush2.msra.mxu0 0.0
        %851 = vmatprep.subr.mxu0 0.0
        %852 = vmatpush2.msra.mxu0 0.0
        %853 = vmatprep.subr.mxu0 0.0
        %854 = vmatpush2.msra.mxu0 0.0
        %855 = vmatprep.subr.mxu0 0.0
        %856 = vmatpush2.msra.mxu0 0.0
        %857 = vmatprep.subr.mxu0 0.0
        %858 = vmatpush2.msra.mxu0 0.0
        %859 = vmatprep.subr.mxu0 0.0
        %860 = vmatpush2.msra.mxu0 0.0
        %861 = vmatprep.subr.mxu0 0.0
        %862 = vmatpush2.msra.mxu0 0.0
        %863 = vmatprep.subr.mxu0 0.0
        %864 = vmatpush2.msra.mxu0 0.0
        %865 = vmatprep.subr.mxu0 0.0
        %866 = vmatpush2.msra.mxu0 0.0
        %867 = vmatprep.subr.mxu0 0.0
        %868 = vmatpush2.msra.mxu0 0.0
        %869 = vmatprep.subr.mxu0 0.0
        %870 = vmatpush2.msra.mxu0 0.0
        %871 = vmatprep.subr.mxu0 0.0
        %872 = vmatpush2.msra.mxu0 0.0
        %873 = vmatprep.subr.mxu0 0.0
        %874 = vmatpush2.msra.mxu0 0.0
        %875 = vmatprep.subr.mxu0 0.0
        %876 = vmatpush2.msra.mxu0 0.0
        %877 = vmatprep.subr.mxu0 0.0
        %878 = vmatpush2.msra.mxu0 0.0
        %879 = vmatprep.subr.mxu0 0.0
        %880 = vmatpush2.msra.mxu0 0.0
        %881 = vmatprep.mubr.f32.mxu0 0.0
        %882 = vmatmul.mubr.f32.gmra.mxu0 %v150
        %v883 = vpop.f32.mrf.mxu0
        %v884 = vadd.f32 0.0, %v883
        %v885 = vpop.f32.mrf.mxu0
        %886 = vdwg.mxu0
        %887 = vmatprep.subr.mxu0 0.0
        %888 = vmatpush1.msra.mxu0 %v800
        %889 = vmatprep.subr.mxu0 0.0
        %890 = vmatpush1.msra.mxu0 %v799
        %891 = vmatprep.subr.mxu0 0.0
        %892 = vmatpush1.msra.mxu0 %v798
        %893 = vmatprep.subr.mxu0 0.0
        %894 = vmatpush1.msra.mxu0 %v797
        %895 = vmatprep.subr.mxu0 0.0
        %896 = vmatpush1.msra.mxu0 %v796
        %897 = vmatprep.subr.mxu0 0.0
        %898 = vmatpush1.msra.mxu0 %v795
        %899 = vmatprep.subr.mxu0 0.0
        %900 = vmatpush1.msra.mxu0 %v794
        %901 = vmatprep.subr.mxu0 0.0
        %902 = vmatpush1.msra.mxu0 %v793
        %903 = vmatprep.subr.mxu0 0.0
        %904 = vmatpush1.msra.mxu0 %v792
        %905 = vmatprep.subr.mxu0 0.0
        %906 = vmatpush1.msra.mxu0 %v791
        %907 = vmatprep.subr.mxu0 0.0
        %908 = vmatpush1.msra.mxu0 %v790
        %909 = vmatprep.subr.mxu0 0.0
        %910 = vmatpush1.msra.mxu0 %v789
        %911 = vmatprep.subr.mxu0 0.0
        %912 = vmatpush1.msra.mxu0 %v788
        %913 = vmatprep.subr.mxu0 0.0
        %914 = vmatpush1.msra.mxu0 %v787
        %915 = vmatprep.subr.mxu0 0.0
        %916 = vmatpush1.msra.mxu0 %v786
        %917 = vmatprep.subr.mxu0 0.0
        %918 = vmatpush1.msra.mxu0 %v785
        %919 = vmatprep.subr.mxu0 0.0
        %920 = vmatpush2.msra.mxu0 0.0
        %921 = vmatprep.subr.mxu0 0.0
        %922 = vmatpush2.msra.mxu0 0.0
        %923 = vmatprep.subr.mxu0 0.0
        %924 = vmatpush2.msra.mxu0 0.0
        %925 = vmatprep.subr.mxu0 0.0
        %926 = vmatpush2.msra.mxu0 0.0
        %927 = vmatprep.subr.mxu0 0.0
        %928 = vmatpush2.msra.mxu0 0.0
        %929 = vmatprep.subr.mxu0 0.0
        %930 = vmatpush2.msra.mxu0 0.0
        %931 = vmatprep.subr.mxu0 0.0
        %932 = vmatpush2.msra.mxu0 0.0
        %933 = vmatprep.subr.mxu0 0.0
        %934 = vmatpush2.msra.mxu0 0.0
        %935 = vmatprep.subr.mxu0 0.0
        %936 = vmatpush2.msra.mxu0 0.0
        %937 = vmatprep.subr.mxu0 0.0
        %938 = vmatpush2.msra.mxu0 0.0
        %939 = vmatprep.subr.mxu0 0.0
        %940 = vmatpush2.msra.mxu0 0.0
        %941 = vmatprep.subr.mxu0 0.0
        %942 = vmatpush2.msra.mxu0 0.0
        %943 = vmatprep.subr.mxu0 0.0
        %944 = vmatpush2.msra.mxu0 0.0
        %945 = vmatprep.subr.mxu0 0.0
        %946 = vmatpush2.msra.mxu0 0.0
        %947 = vmatprep.subr.mxu0 0.0
        %948 = vmatpush2.msra.mxu0 0.0
        %949 = vmatprep.subr.mxu0 0.0
        %950 = vmatpush2.msra.mxu0 0.0
        %951 = vmatprep.mubr.f32.mxu0 0.0
        %952 = vmatmul.mubr.f32.gmra.mxu0 %v604
        %v953 = vpop.f32.mrf.mxu0
        %v954 = vadd.f32 %v884, %v953
        %v955 = vpop.f32.mrf.mxu0
        %956 = vdwg.mxu0
        %v957 = vld [vmem:[#allocation5 + $0x593] sm:$0x1]
        %v958 = vadd.f32 %v954, %v957
        %v959 = vxor.u32 %v958, 2147483648
        %v960 = vmul.f32 %v959, 1.442695
        %v961 = vpow.pop %v960
        %v962 = vadd.f32 %v961, 1.0
        %v963 = vrcp.pop %v962
        %v964 = vmul.f32 1.0, %v963
        %v965 = vld [vmem:[#allocation5 + $0x310] sm:$0xff]
        %v966 = vld [vmem:[#allocation5 + $0x318] sm:$0xff]
        %v967 = vld [vmem:[#allocation5 + $0x320] sm:$0xff]
        %v968 = vld [vmem:[#allocation5 + $0x328] sm:$0xff]
        %v969 = vld [vmem:[#allocation5 + $0x330] sm:$0xff]
        %v970 = vld [vmem:[#allocation5 + $0x338] sm:$0xff]
        %v971 = vld [vmem:[#allocation5 + $0x340] sm:$0xff]
        %v972 = vld [vmem:[#allocation5 + $0x348] sm:$0xff]
        %v973 = vld [vmem:[#allocation5 + $0x350] sm:$0xff]
        %v974 = vld [vmem:[#allocation5 + $0x358] sm:$0xff]
        %v975 = vld [vmem:[#allocation5 + $0x360] sm:$0xff]
        %v976 = vld [vmem:[#allocation5 + $0x368] sm:$0xff]
        %v977 = vld [vmem:[#allocation5 + $0x370] sm:$0xff]
        %v978 = vld [vmem:[#allocation5 + $0x378] sm:$0xff]
        %v979 = vld [vmem:[#allocation5 + $0x380] sm:$0xff]
        %v980 = vld [vmem:[#allocation5 + $0x388] sm:$0xff]
        %v981 = vld [vmem:[#allocation5 + $0x594] sm:$0x1]
        %982 = vmatprep.subr.mxu0 0.0
        %983 = vmatpush1.msra.mxu0 %v980
        %984 = vmatprep.subr.mxu0 0.0
        %985 = vmatpush1.msra.mxu0 %v979
        %986 = vmatprep.subr.mxu0 0.0
        %987 = vmatpush1.msra.mxu0 %v978
        %988 = vmatprep.subr.mxu0 0.0
        %989 = vmatpush1.msra.mxu0 %v977
        %990 = vmatprep.subr.mxu0 0.0
        %991 = vmatpush1.msra.mxu0 %v976
        %992 = vmatprep.subr.mxu0 0.0
        %993 = vmatpush1.msra.mxu0 %v975
        %994 = vmatprep.subr.mxu0 0.0
        %995 = vmatpush1.msra.mxu0 %v974
        %996 = vmatprep.subr.mxu0 0.0
        %997 = vmatpush1.msra.mxu0 %v973
        %998 = vmatprep.subr.mxu0 0.0
        %999 = vmatpush1.msra.mxu0 %v972
        %1000 = vmatprep.subr.mxu0 0.0
        %1001 = vmatpush1.msra.mxu0 %v971
        %1002 = vmatprep.subr.mxu0 0.0
        %1003 = vmatpush1.msra.mxu0 %v970
        %1004 = vmatprep.subr.mxu0 0.0
        %1005 = vmatpush1.msra.mxu0 %v969
        %1006 = vmatprep.subr.mxu0 0.0
        %1007 = vmatpush1.msra.mxu0 %v968
        %1008 = vmatprep.subr.mxu0 0.0
        %1009 = vmatpush1.msra.mxu0 %v967
        %1010 = vmatprep.subr.mxu0 0.0
        %1011 = vmatpush1.msra.mxu0 %v966
        %1012 = vmatprep.subr.mxu0 0.0
        %1013 = vmatpush1.msra.mxu0 %v965
        %1014 = vmatprep.subr.mxu0 0.0
        %1015 = vmatpush2.msra.mxu0 0.0
        %1016 = vmatprep.subr.mxu0 0.0
        %1017 = vmatpush2.msra.mxu0 0.0
        %1018 = vmatprep.subr.mxu0 0.0
        %1019 = vmatpush2.msra.mxu0 0.0
        %1020 = vmatprep.subr.mxu0 0.0
        %1021 = vmatpush2.msra.mxu0 0.0
        %1022 = vmatprep.subr.mxu0 0.0
        %1023 = vmatpush2.msra.mxu0 0.0
        %1024 = vmatprep.subr.mxu0 0.0
        %1025 = vmatpush2.msra.mxu0 0.0
        %1026 = vmatprep.subr.mxu0 0.0
        %1027 = vmatpush2.msra.mxu0 0.0
        %1028 = vmatprep.subr.mxu0 0.0
        %1029 = vmatpush2.msra.mxu0 0.0
        %1030 = vmatprep.subr.mxu0 0.0
        %1031 = vmatpush2.msra.mxu0 0.0
        %1032 = vmatprep.subr.mxu0 0.0
        %1033 = vmatpush2.msra.mxu0 0.0
        %1034 = vmatprep.subr.mxu0 0.0
        %1035 = vmatpush2.msra.mxu0 0.0
        %1036 = vmatprep.subr.mxu0 0.0
        %1037 = vmatpush2.msra.mxu0 0.0
        %1038 = vmatprep.subr.mxu0 0.0
        %1039 = vmatpush2.msra.mxu0 0.0
        %1040 = vmatprep.subr.mxu0 0.0
        %1041 = vmatpush2.msra.mxu0 0.0
        %1042 = vmatprep.subr.mxu0 0.0
        %1043 = vmatpush2.msra.mxu0 0.0
        %1044 = vmatprep.subr.mxu0 0.0
        %1045 = vmatpush2.msra.mxu0 0.0
        %1046 = vmatprep.mubr.f32.mxu0 0.0
        %1047 = vmatmul.mubr.f32.gmra.mxu0 %v604
        %v1048 = vpop.f32.mrf.mxu0
        %v1049 = vadd.f32 %v981, %v1048
        %v1050 = vpop.f32.mrf.mxu0
        %1051 = vdwg.mxu0
        %v1052 = vld [vmem:[#allocation5 + $0x490] sm:$0xff]
        %v1053 = vld [vmem:[#allocation5 + $0x498] sm:$0xff]
        %v1054 = vld [vmem:[#allocation5 + $0x4a0] sm:$0xff]
        %v1055 = vld [vmem:[#allocation5 + $0x4a8] sm:$0xff]
        %v1056 = vld [vmem:[#allocation5 + $0x4b0] sm:$0xff]
        %v1057 = vld [vmem:[#allocation5 + $0x4b8] sm:$0xff]
        %v1058 = vld [vmem:[#allocation5 + $0x4c0] sm:$0xff]
        %v1059 = vld [vmem:[#allocation5 + $0x4c8] sm:$0xff]
        %v1060 = vld [vmem:[#allocation5 + $0x4d0] sm:$0xff]
        %v1061 = vld [vmem:[#allocation5 + $0x4d8] sm:$0xff]
        %v1062 = vld [vmem:[#allocation5 + $0x4e0] sm:$0xff]
        %v1063 = vld [vmem:[#allocation5 + $0x4e8] sm:$0xff]
        %v1064 = vld [vmem:[#allocation5 + $0x4f0] sm:$0xff]
        %v1065 = vld [vmem:[#allocation5 + $0x4f8] sm:$0xff]
        %v1066 = vld [vmem:[#allocation5 + $0x500] sm:$0xff]
        %v1067 = vld [vmem:[#allocation5 + $0x508] sm:$0xff]
        %v1068 = vld [vmem:[#allocation5 + $0x595] sm:$0x1]
        %1069 = vmatprep.subr.mxu0 0.0
        %1070 = vmatpush1.msra.mxu0 %v1067
        %1071 = vmatprep.subr.mxu0 0.0
        %1072 = vmatpush1.msra.mxu0 %v1066
        %1073 = vmatprep.subr.mxu0 0.0
        %1074 = vmatpush1.msra.mxu0 %v1065
        %1075 = vmatprep.subr.mxu0 0.0
        %1076 = vmatpush1.msra.mxu0 %v1064
        %1077 = vmatprep.subr.mxu0 0.0
        %1078 = vmatpush1.msra.mxu0 %v1063
        %1079 = vmatprep.subr.mxu0 0.0
        %1080 = vmatpush1.msra.mxu0 %v1062
        %1081 = vmatprep.subr.mxu0 0.0
        %1082 = vmatpush1.msra.mxu0 %v1061
        %1083 = vmatprep.subr.mxu0 0.0
        %1084 = vmatpush1.msra.mxu0 %v1060
        %1085 = vmatprep.subr.mxu0 0.0
        %1086 = vmatpush1.msra.mxu0 %v1059
        %1087 = vmatprep.subr.mxu0 0.0
        %1088 = vmatpush1.msra.mxu0 %v1058
        %1089 = vmatprep.subr.mxu0 0.0
        %1090 = vmatpush1.msra.mxu0 %v1057
        %1091 = vmatprep.subr.mxu0 0.0
        %1092 = vmatpush1.msra.mxu0 %v1056
        %1093 = vmatprep.subr.mxu0 0.0
        %1094 = vmatpush1.msra.mxu0 %v1055
        %1095 = vmatprep.subr.mxu0 0.0
        %1096 = vmatpush1.msra.mxu0 %v1054
        %1097 = vmatprep.subr.mxu0 0.0
        %1098 = vmatpush1.msra.mxu0 %v1053
        %1099 = vmatprep.subr.mxu0 0.0
        %1100 = vmatpush1.msra.mxu0 %v1052
        %1101 = vmatprep.subr.mxu0 0.0
        %1102 = vmatpush2.msra.mxu0 0.0
        %1103 = vmatprep.subr.mxu0 0.0
        %1104 = vmatpush2.msra.mxu0 0.0
        %1105 = vmatprep.subr.mxu0 0.0
        %1106 = vmatpush2.msra.mxu0 0.0
        %1107 = vmatprep.subr.mxu0 0.0
        %1108 = vmatpush2.msra.mxu0 0.0
        %1109 = vmatprep.subr.mxu0 0.0
        %1110 = vmatpush2.msra.mxu0 0.0
        %1111 = vmatprep.subr.mxu0 0.0
        %1112 = vmatpush2.msra.mxu0 0.0
        %1113 = vmatprep.subr.mxu0 0.0
        %1114 = vmatpush2.msra.mxu0 0.0
        %1115 = vmatprep.subr.mxu0 0.0
        %1116 = vmatpush2.msra.mxu0 0.0
        %1117 = vmatprep.subr.mxu0 0.0
        %1118 = vmatpush2.msra.mxu0 0.0
        %1119 = vmatprep.subr.mxu0 0.0
        %1120 = vmatpush2.msra.mxu0 0.0
        %1121 = vmatprep.subr.mxu0 0.0
        %1122 = vmatpush2.msra.mxu0 0.0
        %1123 = vmatprep.subr.mxu0 0.0
        %1124 = vmatpush2.msra.mxu0 0.0
        %1125 = vmatprep.subr.mxu0 0.0
        %1126 = vmatpush2.msra.mxu0 0.0
        %1127 = vmatprep.subr.mxu0 0.0
        %1128 = vmatpush2.msra.mxu0 0.0
        %1129 = vmatprep.subr.mxu0 0.0
        %1130 = vmatpush2.msra.mxu0 0.0
        %1131 = vmatprep.subr.mxu0 0.0
        %1132 = vmatpush2.msra.mxu0 0.0
        %1133 = vmatprep.mubr.f32.mxu0 0.0
        %1134 = vmatmul.mubr.f32.gmra.mxu0 %v150
        %v1135 = vpop.f32.mrf.mxu0
        %v1136 = vadd.f32 %v1068, %v1135
        %v1137 = vpop.f32.mrf.mxu0
        %1138 = vdwg.mxu0
        %v1139 = vmul.f32 %v784, %v1136
        %v1140 = vadd.f32 %v1049, %v1139
        %v1141 = vtanh.pop %v1140
        %v1142 = vsub.f32 1.0, %v964
        %v1143 = vmul.f32 %v1142, %v1141
        %v1144 = vmul.f32 %v964, %v150
        %v1145 = vadd.f32 %v1143, %v1144
        %1146 = vst [vmem:[#allocation2] sm:$0x1] %v1145
        %v1147 = vld [vmem:[#allocation5 + $0x510] sm:$0xff]
        %v1148 = vld [vmem:[#allocation5 + $0x518] sm:$0xff]
        %v1149 = vld [vmem:[#allocation5 + $0x520] sm:$0xff]
        %v1150 = vld [vmem:[#allocation5 + $0x528] sm:$0xff]
        %v1151 = vld [vmem:[#allocation5 + $0x530] sm:$0xff]
        %v1152 = vld [vmem:[#allocation5 + $0x538] sm:$0xff]
        %v1153 = vld [vmem:[#allocation5 + $0x540] sm:$0xff]
        %v1154 = vld [vmem:[#allocation5 + $0x548] sm:$0xff]
        %v1155 = vld [vmem:[#allocation5 + $0x550] sm:$0xff]
        %v1156 = vld [vmem:[#allocation5 + $0x558] sm:$0xff]
        %v1157 = vld [vmem:[#allocation5 + $0x560] sm:$0xff]
        %v1158 = vld [vmem:[#allocation5 + $0x568] sm:$0xff]
        %v1159 = vld [vmem:[#allocation5 + $0x570] sm:$0xff]
        %v1160 = vld [vmem:[#allocation5 + $0x578] sm:$0xff]
        %v1161 = vld [vmem:[#allocation5 + $0x580] sm:$0xff]
        %v1162 = vld [vmem:[#allocation5 + $0x588] sm:$0xff]
        %v1163 = vld [vmem:[#allocation5 + $0x596] sm:$0x1]
        %1164 = vmatprep.subr.mxu0 0.0
        %1165 = vmatpush1.msra.mxu0 %v1162
        %1166 = vmatprep.subr.mxu0 0.0
        %1167 = vmatpush1.msra.mxu0 %v1161
        %1168 = vmatprep.subr.mxu0 0.0
        %1169 = vmatpush1.msra.mxu0 %v1160
        %1170 = vmatprep.subr.mxu0 0.0
        %1171 = vmatpush1.msra.mxu0 %v1159
        %1172 = vmatprep.subr.mxu0 0.0
        %1173 = vmatpush1.msra.mxu0 %v1158
        %1174 = vmatprep.subr.mxu0 0.0
        %1175 = vmatpush1.msra.mxu0 %v1157
        %1176 = vmatprep.subr.mxu0 0.0
        %1177 = vmatpush1.msra.mxu0 %v1156
        %1178 = vmatprep.subr.mxu0 0.0
        %1179 = vmatpush1.msra.mxu0 %v1155
        %1180 = vmatprep.subr.mxu0 0.0
        %1181 = vmatpush1.msra.mxu0 %v1154
        %1182 = vmatprep.subr.mxu0 0.0
        %1183 = vmatpush1.msra.mxu0 %v1153
        %1184 = vmatprep.subr.mxu0 0.0
        %1185 = vmatpush1.msra.mxu0 %v1152
        %1186 = vmatprep.subr.mxu0 0.0
        %1187 = vmatpush1.msra.mxu0 %v1151
        %1188 = vmatprep.subr.mxu0 0.0
        %1189 = vmatpush1.msra.mxu0 %v1150
        %1190 = vmatprep.subr.mxu0 0.0
        %1191 = vmatpush1.msra.mxu0 %v1149
        %1192 = vmatprep.subr.mxu0 0.0
        %1193 = vmatpush1.msra.mxu0 %v1148
        %1194 = vmatprep.subr.mxu0 0.0
        %1195 = vmatpush1.msra.mxu0 %v1147
        %1196 = vmatprep.subr.mxu0 0.0
        %1197 = vmatpush2.msra.mxu0 0.0
        %1198 = vmatprep.subr.mxu0 0.0
        %1199 = vmatpush2.msra.mxu0 0.0
        %1200 = vmatprep.subr.mxu0 0.0
        %1201 = vmatpush2.msra.mxu0 0.0
        %1202 = vmatprep.subr.mxu0 0.0
        %1203 = vmatpush2.msra.mxu0 0.0
        %1204 = vmatprep.subr.mxu0 0.0
        %1205 = vmatpush2.msra.mxu0 0.0
        %1206 = vmatprep.subr.mxu0 0.0
        %1207 = vmatpush2.msra.mxu0 0.0
        %1208 = vmatprep.subr.mxu0 0.0
        %1209 = vmatpush2.msra.mxu0 0.0
        %1210 = vmatprep.subr.mxu0 0.0
        %1211 = vmatpush2.msra.mxu0 0.0
        %1212 = vmatprep.subr.mxu0 0.0
        %1213 = vmatpush2.msra.mxu0 0.0
        %1214 = vmatprep.subr.mxu0 0.0
        %1215 = vmatpush2.msra.mxu0 0.0
        %1216 = vmatprep.subr.mxu0 0.0
        %1217 = vmatpush2.msra.mxu0 0.0
        %1218 = vmatprep.subr.mxu0 0.0
        %1219 = vmatpush2.msra.mxu0 0.0
        %1220 = vmatprep.subr.mxu0 0.0
        %1221 = vmatpush2.msra.mxu0 0.0
        %1222 = vmatprep.subr.mxu0 0.0
        %1223 = vmatpush2.msra.mxu0 0.0
        %1224 = vmatprep.subr.mxu0 0.0
        %1225 = vmatpush2.msra.mxu0 0.0
        %1226 = vmatprep.subr.mxu0 0.0
        %1227 = vmatpush2.msra.mxu0 0.0
        %1228 = vmatprep.mubr.f32.mxu0 0.0
        %1229 = vmatmul.mubr.f32.gmra.mxu0 %v1145
        %v1230 = vpop.f32.mrf.mxu0
        %v1231 = vadd.f32 %v1163, %v1230
        %v1232 = vpop.f32.mrf.mxu0
        %1233 = vdwg.mxu0
        %v1234 = vsel %vm332, %v1231, -inf
        %1235 = vmax.xlane.f32.xlu0 %v1234
        %v1236 = vpop.xlane.xlu0 %1235
        %v1237 = vsub.f32 %v1231, %v1236
        %v1238 = vmul.f32 %v1237, 1.442695
        %v1239 = vpow.pop %v1238
        %v1240 = vsel %vm332, %v1239, 0.0
        %1241 = vadd.xlane.f32.xlu0 %v1240
        %v1242 = vpop.xlane.xlu0 %1241
        %v1243 = vlog2.pop %v1242
        %v1244 = vmul.f32 %v1243, 0.6931472
        %v1245 = vsub.f32 %v1237, %v1244
        %v1247 = vrot.slane %v1145, 7
        %v1250 = vrot.slane %v343, 6
        %v1252 = vsel %vm332, %v1245, %v1247
        %vm1253 = vcmask 1041408
        %v1254 = vsel %vm1253, %v1252, %v1250
        %vm1255 = vcmask 1042432
        %v1256 = vsel %vm1255, %v1254, 0.0
        %1257 = vst [vmem:[%s143] sm:$0xff] %v1256
        %p1258 = scmp.lt.s32.totalorder %s21, 3
        %s1259 = scalar_select %p1258, %s21, 3
        %s1260 = smul.addr %s1259, 8
        %s1261 = scalar_lea.vmem %s3, %s1260
        // Predicated region
        $region37: #{attn_decoder_decode.1} parent=27 // pred_check
          %p1262 = pneg %p81
        $region38: #{attn_decoder_decode.1} parent=27 // pred_check_branch
          %1264 = sbr.rel (%p1262) target = $region40
        $region39: #{attn_decoder_decode.1} parent=27 // pred_region
          _
        $region40: #{attn_decoder_decode.1} parent=27 // pred_fallthru
          _
      $region28: #{attn_decoder_decode.1} parent=5 // pred_fallthru
        _
      %p1265 = scmp.le.s32.totalorder 2, %s16
      // Predicated region
      $region41: #{attn_decoder_decode.1} parent=5 // pred_check
        %p1266 = pneg %p1265
      $region42: #{attn_decoder_decode.1} parent=5 // pred_check_branch
        %1268 = sbr.rel (%p1266) target = $region44
      $region43: #{attn_decoder_decode.1} parent=5 // pred_region
        %s1269 = ssub.s32 %s16, 2
        // Predicated region
        $region45: #{attn_decoder_decode.1} parent=43 // pred_check
          %p1270 = pneg %p87
        $region46: #{attn_decoder_decode.1} parent=43 // pred_check_branch
          %1272 = sbr.rel (%p1270) target = $region48
        $region47: #{attn_decoder_decode.1} parent=43 // pred_region
          %p1273 = scmp.lt.s32.totalorder %s22, 3
          %s1274 = scalar_select %p1273, %s22, 3
          %s1275 = smul.addr %s1274, 8
          %s1276 = scalar_lea.vmem %s3, %s1275
        $region48: #{attn_decoder_decode.1} parent=43 // pred_fallthru
          _
      $region44: #{attn_decoder_decode.1} parent=5 // pred_fallthru
        _
    $region6: #{attn_decoder_decode.1} parent=1 // loop_footer
      %s20 = sadd.s32 1, %s16
    $region7: #{attn_decoder_decode.1} parent=1 // loop_footer_branch
      %15 = sbr.rel target = $region3
    $region8: #{attn_decoder_decode.1} parent=1 // loop_exit
      _
    %1277 = vsyncpa [#allocation6], 1
    %s1278 = scalar_lea.sflag [#allocation6], 1
    %1279 = vsyncpa %s1278, 1

</llo_original>
